<compile_context>
chip_gen: v6e
topology: v6e:2x2x1
jax: 0.10.0
libtpu: 0.0.40
codegen_flags: <defaults>
</compile_context>

<pallas_src>
from functools import partial

import jax
import jax.numpy as jnp
from jax.experimental import pallas as pl
from jax.experimental.pallas import tpu as pltpu

_LANES = 128
_SUBLANES = 8
_MIB = 1024 * 1024


def _round_up(x, m):
    return ((x + m - 1) // m) * m


def _vmem_info():
    """(physical VMEM bytes, usable budget). Leaves headroom for Mosaic scratch."""
    try:
        cap = int(pltpu.get_tpu_info().vmem_capacity_bytes)
    except Exception:
        cap = 64 * _MIB  # conservative fallback (v7x per-TensorCore)
    budget = max(min(int(0.80 * cap), cap - 12 * _MIB), 16 * _MIB)
    return cap, budget


# ---------------------------------------------------------------------------
# Primary path: whole MLP fused in ONE pallas_call, weights VMEM-resident.
# ---------------------------------------------------------------------------
def _mlp_kernel(x_ref, *refs, num_layers):
    """o = L_{n-1}(relu(L_{n-2}(... relu(L_0(x)) ...))); activations stay in VMEM."""
    o_ref = refs[-1]
    p = refs[:-1]                        # (w0, b0, w1, b1, ...)
    h = x_ref[...]                       # bf16 tile straight off the DMA
    for i in range(num_layers):
        w = p[2 * i][...]                # (K_i, Npad_i)  bf16
        b = p[2 * i + 1][...]            # (1, Npad_i)    f32
        y = jnp.dot(h, w, preferred_element_type=jnp.float32) + b   # f32 accum
        if i < num_layers - 1:
            h = jnp.maximum(y, 0.0).astype(jnp.bfloat16)            # feed MXU bf16
        else:
            h = y
    o_ref[...] = h.astype(o_ref.dtype)


def _mlp_fused(x_bf, w_kern, b_kern, out_dtype, *, cap, budget,
               param_buf_factor, single_buffer_params):
    n, d_in = x_bf.shape
    num_layers = len(w_kern)
    out_pad = w_kern[-1].shape[1]
    out_bytes = jnp.dtype(out_dtype).itemsize
    widths = [d_in] + [w.shape[1] for w in w_kern]
    max_w = max(widths)
    resident = sum(w.size * 2 for w in w_kern) + sum(b.size * 4 for b in b_kern)

    def need(tn):
        tiles = 2 * tn * d_in * 2 + 2 * tn * out_pad * out_bytes  # dbl-buf x / out
        live = tn * max_w * (4 + 2)                               # f32 y + bf16 h
        return int(1.15 * (param_buf_factor * resident + tiles + live)) + _MIB

    if need(_SUBLANES) > budget:
        # Resident weights don't fit this core's VMEM (v7x hazard) -> caller
        # falls back to the per-layer tiled path.
        raise ValueError("resident MLP parameters exceed the VMEM budget")

    tile_n = _SUBLANES
    for cand in (2048, 1024, 512, 256, 128, 64, 32, 16, 8):
        if need(cand) <= budget:
            tile_n = cand
            break
    tile_n = min(tile_n, _round_up(n, _SUBLANES))
    # Guarantee >=2 row-grid steps when possible so both v7x TensorCores work.
    if _round_up(n, _SUBLANES) >= 2 * _SUBLANES:
        tile_n = min(tile_n, _round_up((n + 1) // 2, _SUBLANES))

    grid = (pl.cdiv(n, tile_n),)
    vmem_limit = int(min(cap - 8 * _MIB, max(2 * need(tile_n), 32 * _MIB)))

    pm = {}
    if single_buffer_params and hasattr(pl, "Buffered"):
        pm = dict(pipeline_mode=pl.Buffered(1))  # params are grid-invariant

    in_specs = [pl.BlockSpec((tile_n, d_in), lambda i: (i, 0))]
    flat = []
    for w, b in zip(w_kern, b_kern):
        in_specs.append(pl.BlockSpec(w.shape, lambda i: (0, 0), **pm))
        in_specs.append(pl.BlockSpec(b.shape, lambda i: (0, 0), **pm))
        flat += [w, b]

    flops = 2 * n * sum(w.shape[0] * w.shape[1] for w in w_kern)
    bytes_accessed = x_bf.size * 2 + resident + n * out_pad * out_bytes
    cost = pl.CostEstimate(flops=flops, transcendentals=0,
                           bytes_accessed=bytes_accessed)

    return pl.pallas_call(
        partial(_mlp_kernel, num_layers=num_layers),
        out_shape=jax.ShapeDtypeStruct((n, out_pad), out_dtype),
        grid=grid,
        in_specs=in_specs,
        out_specs=pl.BlockSpec((tile_n, out_pad), lambda i: (i, 0)),
        compiler_params=pltpu.CompilerParams(
            dimension_semantics=("parallel",),
            vmem_limit_bytes=vmem_limit),
        cost_estimate=cost,
    )(x_bf, *flat)


# ---------------------------------------------------------------------------
# Fallback path: per-layer tiled matmul + bias (+ ReLU) with an (M, N, K) grid.
# Used when resident weights exceed the per-core VMEM budget (e.g. v7x 64 MiB).
# ---------------------------------------------------------------------------
def _linear_kernel(x_ref, w_ref, b_ref, o_ref, acc_ref, *, apply_relu):
    @pl.when(pl.program_id(2) == 0)
    def _():
        acc_ref[...] = jnp.zeros_like(acc_ref)

    acc_ref[...] += jnp.dot(x_ref[...], w_ref[...],
                            preferred_element_type=jnp.float32)

    @pl.when(pl.program_id(2) == pl.num_programs(2) - 1)
    def _():
        y = acc_ref[...] + b_ref[...]
        if apply_relu:
            y = jnp.maximum(y, 0.0)
        o_ref[...] = y.astype(o_ref.dtype)


def _pick_div_tile(dim, cands):
    if dim % _LANES != 0:
        return dim            # block dim equal to full array dim is always legal
    for c in cands:
        if dim % c == 0:
            return c
    return dim


def _linear_pallas(x2d, w, b, *, apply_relu, out_dtype, cap, budget):
    n, kd = x2d.shape
    assert w.shape[0] == kd
    nout = w.shape[1]
    xb = jnp.dtype(x2d.dtype).itemsize
    ob = jnp.dtype(out_dtype).itemsize
    tk = _pick_div_tile(kd, (512, 256, 128))
    tn = _pick_div_tile(nout, (512, 256, 128))

    def need(tm):
        return int(1.15 * (2 * tm * tk * xb + 2 * tk * tn * 2 + 2 * tn * 4
                           + 2 * tm * tn * ob + tm * tn * 4)) + _MIB

    tm = _SUBLANES
    for cand in (1024, 512, 256, 128, 64, 32, 16, 8):
        if need(cand) <= budget:
            tm = cand
            break
    tm = min(tm, _round_up(n, _SUBLANES))
    if _round_up(n, _SUBLANES) >= 2 * _SUBLANES:
        tm = min(tm, _round_up((n + 1) // 2, _SUBLANES))

    grid = (pl.cdiv(n, tm), nout // tn, kd // tk)
    vmem_limit = int(min(cap - 8 * _MIB, max(2 * need(tm), 32 * _MIB)))

    return pl.pallas_call(
        partial(_linear_kernel, apply_relu=apply_relu),
        out_shape=jax.ShapeDtypeStruct((n, nout), out_dtype),
        grid=grid,
        in_specs=[pl.BlockSpec((tm, tk), lambda i, j, k: (i, k)),
                  pl.BlockSpec((tk, tn), lambda i, j, k: (k, j)),
                  pl.BlockSpec((1, tn), lambda i, j, k: (0, j))],
        out_specs=pl.BlockSpec((tm, tn), lambda i, j, k: (i, j)),
        scratch_shapes=[pltpu.VMEM((tm, tn), jnp.float32)],
        compiler_params=pltpu.CompilerParams(
            dimension_semantics=("parallel", "parallel", "arbitrary"),
            vmem_limit_bytes=vmem_limit),
    )(x2d, w, b)


# ---------------------------------------------------------------------------
# Module wrapper
# ---------------------------------------------------------------------------
class MLP:
    """JAX/Pallas port of the PyTorch MLP (fused single-kernel forward)."""

    def __init__(self, input_dim, hidden_dim, output_dim, num_layers, key):
        self.num_layers = num_layers
        self.input_dim = input_dim
        self.output_dim = output_dim
        h = [hidden_dim] * (num_layers - 1)
        dims_in = [input_dim] + h
        dims_out = h + [output_dim]

        self.params = []   # unpadded f32 (w, b): reference numerics
        self.w_kern = []   # kernel weights: bf16; layer-0 K unpadded, N padded to 128
        self.b_kern = []   # kernel biases:  f32 (1, Npad)
        for i, (n_in, n_out) in enumerate(zip(dims_in, dims_out)):
            kw, kb, key = jax.random.split(key, 3)
            bound = 1.0 / (n_in ** 0.5)   # nn.Linear default U(-1/sqrt(fan_in), ...)
            w = jax.random.uniform(kw, (n_in, n_out), jnp.float32, -bound, bound)
            b = jax.random.uniform(kb, (n_out,), jnp.float32, -bound, bound)
            self.params.append((w, b))

            k_pad = n_in if i == 0 else _round_up(n_in, _LANES)
            n_pad = _round_up(n_out, _LANES)
            w_p = jnp.zeros((k_pad, n_pad), jnp.float32).at[:n_in, :n_out].set(w)
            b_p = jnp.zeros((1, n_pad), jnp.float32).at[0, :n_out].set(b)
            self.w_kern.append(w_p.astype(jnp.bfloat16))
            self.b_kern.append(b_p)

    def __call__(self, x, force_per_layer=False):
        lead = x.shape[:-1]
        x2d = x.reshape(-1, x.shape[-1])
        out_dtype = x.dtype
        # bf16 MXU operands (halves x DMA bytes and the input tile footprint).
        x_bf = x2d if x2d.dtype == jnp.bfloat16 else x2d.astype(jnp.bfloat16)

        cap, budget = _vmem_info()
        y = None
        if not force_per_layer:
            try:   # preferred: single-buffered VMEM-resident params
                y = _mlp_fused(x_bf, self.w_kern, self.b_kern, out_dtype,
                               cap=cap, budget=budget,
                               param_buf_factor=1, single_buffer_params=True)
            except Exception:
                y = None
            if y is None:
                try:   # still fused, default double-buffered params
                    y = _mlp_fused(x_bf, self.w_kern, self.b_kern, out_dtype,
                                   cap=cap, budget=budget,
                                   param_buf_factor=2, single_buffer_params=False)
                except Exception:
                    y = None
        if y is None:
            # Per-layer tiled fallback (weights too large to stay VMEM-resident).
            h2 = x_bf
            for i, (w, b) in enumerate(zip(self.w_kern, self.b_kern)):
                last = i == self.num_layers - 1
                h2 = _linear_pallas(h2, w, b, apply_relu=not last,
                                    out_dtype=out_dtype if last else jnp.bfloat16,
                                    cap=cap, budget=budget)
            y = h2

        if y.shape[1] != self.output_dim:          # skip the slice when it is a no-op
            y = y[:, :self.output_dim]
        return y.reshape(*lead, self.output_dim)


# ---------------------------------------------------------------------------
# References + self-test
# ---------------------------------------------------------------------------
def _reference_forward_f32(params, num_layers, x):
    x2d = x.reshape(-1, x.shape[-1])
    for i, (w, b) in enumerate(params):
        y = x2d @ w + b
        x2d = jnp.maximum(y, 0.0) if i < num_layers - 1 else y
    return x2d.reshape(*x.shape[:-1], x2d.shape[-1])


def _reference_forward_bf16(params, num_layers, x):
    # Mirrors the kernel numerics: bf16 operands, f32 accumulation, f32 epilogue.
    x2d = x.reshape(-1, x.shape[-1]).astype(jnp.bfloat16)
    for i, (w, b) in enumerate(params):
        y = jnp.dot(x2d, w.astype(jnp.bfloat16),
                    preferred_element_type=jnp.float32) + b
        x2d = jnp.maximum(y, 0.0).astype(jnp.bfloat16) if i < num_layers - 1 else y
    return x2d.reshape(*x.shape[:-1], x2d.shape[-1])


if __name__ == "__main__":
    key = jax.random.PRNGKey(0)
    k_x, k_p = jax.random.split(key)

    batch, input_dim, hidden_dim, output_dim, num_layers = 20, 32, 64, 16, 3
    x = jax.random.normal(k_x, (batch, input_dim), jnp.float32)

    mlp = MLP(input_dim, hidden_dim, output_dim, num_layers, k_p)

    out = jax.block_until_ready(mlp(x))                              # fused path
    out_pl = jax.block_until_ready(mlp(x, force_per_layer=True))     # tiled fallback

    assert out.shape == (batch, output_dim)
    assert out.dtype == x.dtype

    ref_bf16 = _reference_forward_bf16(mlp.params, num_layers, x)
    ref_f32 = _reference_forward_f32(mlp.params, num_layers, x)

    # Tight checks vs. a reference using the same bf16-operand / f32-accum math.
    assert jnp.allclose(out, ref_bf16, atol=2e-3, rtol=2e-3), \
        float(jnp.max(jnp.abs(out - ref_bf16)))
    assert jnp.allclose(out_pl, ref_bf16, atol=2e-3, rtol=2e-3), \
        float(jnp.max(jnp.abs(out_pl - ref_bf16)))
    # Loose check vs. the pure-f32 PyTorch-equivalent math (bf16 operand error).
    assert jnp.allclose(out, ref_f32, atol=5e-2, rtol=5e-2), \
        float(jnp.max(jnp.abs(out - ref_f32)))

    print("KERNEL_OK")
</pallas_src>

<mosaic_0001>
module attributes {stable_mosaic.version = 11 : i64} {
  func.func @_mlp_kernel(%arg0: i32, %arg1: memref<16x32xbf16, #tpu.memory_space<vmem>>, %arg2: memref<32x128xbf16, #tpu.memory_space<vmem>>, %arg3: memref<1x128xf32, #tpu.memory_space<vmem>>, %arg4: memref<128x128xbf16, #tpu.memory_space<vmem>>, %arg5: memref<1x128xf32, #tpu.memory_space<vmem>>, %arg6: memref<128x128xbf16, #tpu.memory_space<vmem>>, %arg7: memref<1x128xf32, #tpu.memory_space<vmem>>, %arg8: memref<16x128xf32, #tpu.memory_space<vmem>>) attributes {dimension_semantics = [#tpu.dimension_semantics<parallel>], iteration_bounds = array<i64: 2>, scalar_prefetch = 0 : i64, scratch_operands = 0 : i64, tpu.core_type = #tpu.core_type<tc>, window_params = [{transform_indices = @transform_0, window_bounds = array<i64: 16, 32>}, {pipeline_mode = #tpu.pipeline_mode<synchronous>, transform_indices = @transform_1, window_bounds = array<i64: 32, 128>}, {pipeline_mode = #tpu.pipeline_mode<synchronous>, transform_indices = @transform_2, window_bounds = array<i64: 1, 128>}, {pipeline_mode = #tpu.pipeline_mode<synchronous>, transform_indices = @transform_3, window_bounds = array<i64: 128, 128>}, {pipeline_mode = #tpu.pipeline_mode<synchronous>, transform_indices = @transform_4, window_bounds = array<i64: 1, 128>}, {pipeline_mode = #tpu.pipeline_mode<synchronous>, transform_indices = @transform_5, window_bounds = array<i64: 128, 128>}, {pipeline_mode = #tpu.pipeline_mode<synchronous>, transform_indices = @transform_6, window_bounds = array<i64: 1, 128>}, {transform_indices = @transform_7, window_bounds = array<i64: 16, 128>}]} {
    %c0 = arith.constant 0 : index
    %c0_0 = arith.constant 0 : index
    %0 = vector.load %arg1[%c0, %c0_0] : memref<16x32xbf16, #tpu.memory_space<vmem>>, vector<16x32xbf16>
    %c0_1 = arith.constant 0 : index
    %c0_2 = arith.constant 0 : index
    %1 = vector.load %arg2[%c0_1, %c0_2] : memref<32x128xbf16, #tpu.memory_space<vmem>>, vector<32x128xbf16>
    %c0_3 = arith.constant 0 : index
    %c0_4 = arith.constant 0 : index
    %2 = vector.load %arg3[%c0_3, %c0_4] : memref<1x128xf32, #tpu.memory_space<vmem>>, vector<1x128xf32>
    %cst = arith.constant dense<0.000000e+00> : vector<16x128xf32>
    %3 = tpu.matmul %0, %1, %cst {dimension_numbers = #tpu.dot_dimension_numbers<[1], [0], [0], [1], [0, 0, 1, 1], [], []>} : vector<16x32xbf16>, vector<32x128xbf16>, vector<16x128xf32> -> vector<16x128xf32>
    %4 = vector.broadcast %2 : vector<1x128xf32> to vector<16x128xf32>
    %5 = arith.addf %3, %4 : vector<16x128xf32>
    %cst_5 = arith.constant 0.000000e+00 : f32
    %6 = vector.broadcast %cst_5 : f32 to vector<16x128xf32>
    %7 = arith.maximumf %5, %6 : vector<16x128xf32>
    %8 = arith.truncf %7 : vector<16x128xf32> to vector<16x128xbf16>
    %c0_6 = arith.constant 0 : index
    %c0_7 = arith.constant 0 : index
    %9 = vector.load %arg4[%c0_6, %c0_7] : memref<128x128xbf16, #tpu.memory_space<vmem>>, vector<128x128xbf16>
    %c0_8 = arith.constant 0 : index
    %c0_9 = arith.constant 0 : index
    %10 = vector.load %arg5[%c0_8, %c0_9] : memref<1x128xf32, #tpu.memory_space<vmem>>, vector<1x128xf32>
    %cst_10 = arith.constant dense<0.000000e+00> : vector<16x128xf32>
    %11 = tpu.matmul %8, %9, %cst_10 {dimension_numbers = #tpu.dot_dimension_numbers<[1], [0], [0], [1], [0, 0, 1, 1], [], []>} : vector<16x128xbf16>, vector<128x128xbf16>, vector<16x128xf32> -> vector<16x128xf32>
    %12 = vector.broadcast %10 : vector<1x128xf32> to vector<16x128xf32>
    %13 = arith.addf %11, %12 : vector<16x128xf32>
    %cst_11 = arith.constant 0.000000e+00 : f32
    %14 = vector.broadcast %cst_11 : f32 to vector<16x128xf32>
    %15 = arith.maximumf %13, %14 : vector<16x128xf32>
    %16 = arith.truncf %15 : vector<16x128xf32> to vector<16x128xbf16>
    %c0_12 = arith.constant 0 : index
    %c0_13 = arith.constant 0 : index
    %17 = vector.load %arg6[%c0_12, %c0_13] : memref<128x128xbf16, #tpu.memory_space<vmem>>, vector<128x128xbf16>
    %c0_14 = arith.constant 0 : index
    %c0_15 = arith.constant 0 : index
    %18 = vector.load %arg7[%c0_14, %c0_15] : memref<1x128xf32, #tpu.memory_space<vmem>>, vector<1x128xf32>
    %cst_16 = arith.constant dense<0.000000e+00> : vector<16x128xf32>
    %19 = tpu.matmul %16, %17, %cst_16 {dimension_numbers = #tpu.dot_dimension_numbers<[1], [0], [0], [1], [0, 0, 1, 1], [], []>} : vector<16x128xbf16>, vector<128x128xbf16>, vector<16x128xf32> -> vector<16x128xf32>
    %20 = vector.broadcast %18 : vector<1x128xf32> to vector<16x128xf32>
    %21 = arith.addf %19, %20 : vector<16x128xf32>
    %c0_17 = arith.constant 0 : index
    %c0_18 = arith.constant 0 : index
    %22 = vector.load %arg8[%c0_17, %c0_18] : memref<16x128xf32, #tpu.memory_space<vmem>>, vector<16x128xf32>
    tpu.vector_store %arg8[%c0_17, %c0_18], %21 {strides = array<i32>} : memref<16x128xf32, #tpu.memory_space<vmem>>, vector<16x128xf32>,
    return
  }
  func.func @transform_0(%arg0: i32) -> (i32, i32) {
    %c0_i32 = arith.constant 0 : i32
    %c0_i32_0 = arith.constant 0 : i32
    return %arg0, %c0_i32 : i32, i32
  }
  func.func @transform_1(%arg0: i32) -> (i32, i32) {
    %c0_i32 = arith.constant 0 : i32
    %c0_i32_0 = arith.constant 0 : i32
    %c0_i32_1 = arith.constant 0 : i32
    return %c0_i32, %c0_i32_0 : i32, i32
  }
  func.func @transform_2(%arg0: i32) -> (i32, i32) {
    %c0_i32 = arith.constant 0 : i32
    %c0_i32_0 = arith.constant 0 : i32
    %c0_i32_1 = arith.constant 0 : i32
    return %c0_i32, %c0_i32_0 : i32, i32
  }
  func.func @transform_3(%arg0: i32) -> (i32, i32) {
    %c0_i32 = arith.constant 0 : i32
    %c0_i32_0 = arith.constant 0 : i32
    %c0_i32_1 = arith.constant 0 : i32
    return %c0_i32, %c0_i32_0 : i32, i32
  }
  func.func @transform_4(%arg0: i32) -> (i32, i32) {
    %c0_i32 = arith.constant 0 : i32
    %c0_i32_0 = arith.constant 0 : i32
    %c0_i32_1 = arith.constant 0 : i32
    return %c0_i32, %c0_i32_0 : i32, i32
  }
  func.func @transform_5(%arg0: i32) -> (i32, i32) {
    %c0_i32 = arith.constant 0 : i32
    %c0_i32_0 = arith.constant 0 : i32
    %c0_i32_1 = arith.constant 0 : i32
    return %c0_i32, %c0_i32_0 : i32, i32
  }
  func.func @transform_6(%arg0: i32) -> (i32, i32) {
    %c0_i32 = arith.constant 0 : i32
    %c0_i32_0 = arith.constant 0 : i32
    %c0_i32_1 = arith.constant 0 : i32
    return %c0_i32, %c0_i32_0 : i32, i32
  }
  func.func @transform_7(%arg0: i32) -> (i32, i32) {
    %c0_i32 = arith.constant 0 : i32
    %c0_i32_0 = arith.constant 0 : i32
    return %arg0, %c0_i32 : i32, i32
  }
}

module attributes {stable_mosaic.version = 11 : i64} {
  func.func @_mlp_kernel(%arg0: i32, %arg1: memref<16x32xbf16, #tpu.memory_space<vmem>>, %arg2: memref<32x128xbf16, #tpu.memory_space<vmem>>, %arg3: memref<1x128xf32, #tpu.memory_space<vmem>>, %arg4: memref<128x128xbf16, #tpu.memory_space<vmem>>, %arg5: memref<1x128xf32, #tpu.memory_space<vmem>>, %arg6: memref<128x128xbf16, #tpu.memory_space<vmem>>, %arg7: memref<1x128xf32, #tpu.memory_space<vmem>>, %arg8: memref<16x128xf32, #tpu.memory_space<vmem>>) attributes {dimension_semantics = [#tpu.dimension_semantics<parallel>], iteration_bounds = array<i64: 2>, scalar_prefetch = 0 : i64, scratch_operands = 0 : i64, tpu.core_type = #tpu.core_type<tc>, window_params = [{transform_indices = @transform_0, window_bounds = array<i64: 16, 32>}, {pipeline_mode = #tpu.pipeline_mode<synchronous>, transform_indices = @transform_1, window_bounds = array<i64: 32, 128>}, {pipeline_mode = #tpu.pipeline_mode<synchronous>, transform_indices = @transform_2, window_bounds = array<i64: 1, 128>}, {pipeline_mode = #tpu.pipeline_mode<synchronous>, transform_indices = @transform_3, window_bounds = array<i64: 128, 128>}, {pipeline_mode = #tpu.pipeline_mode<synchronous>, transform_indices = @transform_4, window_bounds = array<i64: 1, 128>}, {pipeline_mode = #tpu.pipeline_mode<synchronous>, transform_indices = @transform_5, window_bounds = array<i64: 128, 128>}, {pipeline_mode = #tpu.pipeline_mode<synchronous>, transform_indices = @transform_6, window_bounds = array<i64: 1, 128>}, {transform_indices = @transform_7, window_bounds = array<i64: 16, 128>}]} {
    %c0 = arith.constant 0 : index
    %c0_0 = arith.constant 0 : index
    %0 = vector.load %arg1[%c0, %c0_0] : memref<16x32xbf16, #tpu.memory_space<vmem>>, vector<16x32xbf16>
    %c0_1 = arith.constant 0 : index
    %c0_2 = arith.constant 0 : index
    %1 = vector.load %arg2[%c0_1, %c0_2] : memref<32x128xbf16, #tpu.memory_space<vmem>>, vector<32x128xbf16>
    %c0_3 = arith.constant 0 : index
    %c0_4 = arith.constant 0 : index
    %2 = vector.load %arg3[%c0_3, %c0_4] : memref<1x128xf32, #tpu.memory_space<vmem>>, vector<1x128xf32>
    %cst = arith.constant dense<0.000000e+00> : vector<16x128xf32>
    %3 = tpu.matmul %0, %1, %cst {dimension_numbers = #tpu.dot_dimension_numbers<[1], [0], [0], [1], [0, 0, 1, 1], [], []>} : vector<16x32xbf16>, vector<32x128xbf16>, vector<16x128xf32> -> vector<16x128xf32>
    %4 = vector.broadcast %2 : vector<1x128xf32> to vector<16x128xf32>
    %5 = arith.addf %3, %4 : vector<16x128xf32>
    %cst_5 = arith.constant 0.000000e+00 : f32
    %6 = vector.broadcast %cst_5 : f32 to vector<16x128xf32>
    %7 = arith.maximumf %5, %6 : vector<16x128xf32>
    %8 = arith.truncf %7 : vector<16x128xf32> to vector<16x128xbf16>
    %c0_6 = arith.constant 0 : index
    %c0_7 = arith.constant 0 : index
    %9 = vector.load %arg4[%c0_6, %c0_7] : memref<128x128xbf16, #tpu.memory_space<vmem>>, vector<128x128xbf16>
    %c0_8 = arith.constant 0 : index
    %c0_9 = arith.constant 0 : index
    %10 = vector.load %arg5[%c0_8, %c0_9] : memref<1x128xf32, #tpu.memory_space<vmem>>, vector<1x128xf32>
    %cst_10 = arith.constant dense<0.000000e+00> : vector<16x128xf32>
    %11 = tpu.matmul %8, %9, %cst_10 {dimension_numbers = #tpu.dot_dimension_numbers<[1], [0], [0], [1], [0, 0, 1, 1], [], []>} : vector<16x128xbf16>, vector<128x128xbf16>, vector<16x128xf32> -> vector<16x128xf32>
    %12 = vector.broadcast %10 : vector<1x128xf32> to vector<16x128xf32>
    %13 = arith.addf %11, %12 : vector<16x128xf32>
    %cst_11 = arith.constant 0.000000e+00 : f32
    %14 = vector.broadcast %cst_11 : f32 to vector<16x128xf32>
    %15 = arith.maximumf %13, %14 : vector<16x128xf32>
    %16 = arith.truncf %15 : vector<16x128xf32> to vector<16x128xbf16>
    %c0_12 = arith.constant 0 : index
    %c0_13 = arith.constant 0 : index
    %17 = vector.load %arg6[%c0_12, %c0_13] : memref<128x128xbf16, #tpu.memory_space<vmem>>, vector<128x128xbf16>
    %c0_14 = arith.constant 0 : index
    %c0_15 = arith.constant 0 : index
    %18 = vector.load %arg7[%c0_14, %c0_15] : memref<1x128xf32, #tpu.memory_space<vmem>>, vector<1x128xf32>
    %cst_16 = arith.constant dense<0.000000e+00> : vector<16x128xf32>
    %19 = tpu.matmul %16, %17, %cst_16 {dimension_numbers = #tpu.dot_dimension_numbers<[1], [0], [0], [1], [0, 0, 1, 1], [], []>} : vector<16x128xbf16>, vector<128x128xbf16>, vector<16x128xf32> -> vector<16x128xf32>
    %20 = vector.broadcast %18 : vector<1x128xf32> to vector<16x128xf32>
    %21 = arith.addf %19, %20 : vector<16x128xf32>
    %c0_17 = arith.constant 0 : index
    %c0_18 = arith.constant 0 : index
    %22 = vector.load %arg8[%c0_17, %c0_18] : memref<16x128xf32, #tpu.memory_space<vmem>>, vector<16x128xf32>
    tpu.vector_store %arg8[%c0_17, %c0_18], %21 {strides = array<i32>} : memref<16x128xf32, #tpu.memory_space<vmem>>, vector<16x128xf32>,
    return
  }
  func.func @transform_0(%arg0: i32) -> (i32, i32) {
    %c0_i32 = arith.constant 0 : i32
    %c0_i32_0 = arith.constant 0 : i32
    return %arg0, %c0_i32 : i32, i32
  }
  func.func @transform_1(%arg0: i32) -> (i32, i32) {
    %c0_i32 = arith.constant 0 : i32
    %c0_i32_0 = arith.constant 0 : i32
    %c0_i32_1 = arith.constant 0 : i32
    return %c0_i32, %c0_i32_0 : i32, i32
  }
  func.func @transform_2(%arg0: i32) -> (i32, i32) {
    %c0_i32 = arith.constant 0 : i32
    %c0_i32_0 = arith.constant 0 : i32
    %c0_i32_1 = arith.constant 0 : i32
    return %c0_i32, %c0_i32_0 : i32, i32
  }
  func.func @transform_3(%arg0: i32) -> (i32, i32) {
    %c0_i32 = arith.constant 0 : i32
    %c0_i32_0 = arith.constant 0 : i32
    %c0_i32_1 = arith.constant 0 : i32
    return %c0_i32, %c0_i32_0 : i32, i32
  }
  func.func @transform_4(%arg0: i32) -> (i32, i32) {
    %c0_i32 = arith.constant 0 : i32
    %c0_i32_0 = arith.constant 0 : i32
    %c0_i32_1 = arith.constant 0 : i32
    return %c0_i32, %c0_i32_0 : i32, i32
  }
  func.func @transform_5(%arg0: i32) -> (i32, i32) {
    %c0_i32 = arith.constant 0 : i32
    %c0_i32_0 = arith.constant 0 : i32
    %c0_i32_1 = arith.constant 0 : i32
    return %c0_i32, %c0_i32_0 : i32, i32
  }
  func.func @transform_6(%arg0: i32) -> (i32, i32) {
    %c0_i32 = arith.constant 0 : i32
    %c0_i32_0 = arith.constant 0 : i32
    %c0_i32_1 = arith.constant 0 : i32
    return %c0_i32, %c0_i32_0 : i32, i32
  }
  func.func @transform_7(%arg0: i32) -> (i32, i32) {
    %c0_i32 = arith.constant 0 : i32
    %c0_i32_0 = arith.constant 0 : i32
    return %arg0, %c0_i32 : i32, i32
  }
}

module attributes {stable_mosaic.version = 11 : i64} {
  func.func @_linear_kernel(%arg0: i32, %arg1: i32, %arg2: i32, %arg3: memref<16x32xbf16, #tpu.memory_space<vmem>>, %arg4: memref<32x128xbf16, #tpu.memory_space<vmem>>, %arg5: memref<1x128xf32, #tpu.memory_space<vmem>>, %arg6: memref<16x128xbf16, #tpu.memory_space<vmem>>, %arg7: memref<16x128xf32, #tpu.memory_space<vmem>>) attributes {dimension_semantics = [#tpu.dimension_semantics<parallel>, #tpu.dimension_semantics<parallel>, #tpu.dimension_semantics<arbitrary>], iteration_bounds = array<i64: 2, 1, 1>, scalar_prefetch = 0 : i64, scratch_operands = 1 : i64, tpu.core_type = #tpu.core_type<tc>, window_params = [{transform_indices = @transform_0, window_bounds = array<i64: 16, 32>}, {transform_indices = @transform_1, window_bounds = array<i64: 32, 128>}, {transform_indices = @transform_2, window_bounds = array<i64: 1, 128>}, {transform_indices = @transform_3, window_bounds = array<i64: 16, 128>}]} {
    %c0_i32 = arith.constant 0 : i32
    %0 = arith.cmpi eq, %arg2, %c0_i32 : i32
    %1 = arith.extui %0 : i1 to i32
    %c0_i32_0 = arith.constant 0 : i32
    %2 = arith.cmpi ne, %1, %c0_i32_0 : i32
    scf.if %2 {
      %cst_10 = arith.constant 0.000000e+00 : f32
      %12 = vector.broadcast %cst_10 : f32 to vector<16x128xf32>
      %c0_11 = arith.constant 0 : index
      %c0_12 = arith.constant 0 : index
      %13 = vector.load %arg7[%c0_11, %c0_12] : memref<16x128xf32, #tpu.memory_space<vmem>>, vector<16x128xf32>
      tpu.vector_store %arg7[%c0_11, %c0_12], %12 {strides = array<i32>} : memref<16x128xf32, #tpu.memory_space<vmem>>, vector<16x128xf32>,
    } else {
    }
    %c0 = arith.constant 0 : index
    %c0_1 = arith.constant 0 : index
    %3 = vector.load %arg7[%c0, %c0_1] : memref<16x128xf32, #tpu.memory_space<vmem>>, vector<16x128xf32>
    %c0_2 = arith.constant 0 : index
    %c0_3 = arith.constant 0 : index
    %4 = vector.load %arg3[%c0_2, %c0_3] : memref<16x32xbf16, #tpu.memory_space<vmem>>, vector<16x32xbf16>
    %c0_4 = arith.constant 0 : index
    %c0_5 = arith.constant 0 : index
    %5 = vector.load %arg4[%c0_4, %c0_5] : memref<32x128xbf16, #tpu.memory_space<vmem>>, vector<32x128xbf16>
    %cst = arith.constant dense<0.000000e+00> : vector<16x128xf32>
    %6 = tpu.matmul %4, %5, %cst {dimension_numbers = #tpu.dot_dimension_numbers<[1], [0], [0], [1], [0, 0, 1, 1], [], []>} : vector<16x32xbf16>, vector<32x128xbf16>, vector<16x128xf32> -> vector<16x128xf32>
    %7 = arith.addf %3, %6 : vector<16x128xf32>
    %c0_6 = arith.constant 0 : index
    %c0_7 = arith.constant 0 : index
    %8 = vector.load %arg7[%c0_6, %c0_7] : memref<16x128xf32, #tpu.memory_space<vmem>>, vector<16x128xf32>
    tpu.vector_store %arg7[%c0_6, %c0_7], %7 {strides = array<i32>} : memref<16x128xf32, #tpu.memory_space<vmem>>, vector<16x128xf32>,
    %c0_i32_8 = arith.constant 0 : i32
    %9 = arith.cmpi eq, %arg2, %c0_i32_8 : i32
    %10 = arith.extui %9 : i1 to i32
    %c0_i32_9 = arith.constant 0 : i32
    %11 = arith.cmpi ne, %10, %c0_i32_9 : i32
    scf.if %11 {
      %c0_10 = arith.constant 0 : index
      %c0_11 = arith.constant 0 : index
      %12 = vector.load %arg7[%c0_10, %c0_11] : memref<16x128xf32, #tpu.memory_space<vmem>>, vector<16x128xf32>
      %c0_12 = arith.constant 0 : index
      %c0_13 = arith.constant 0 : index
      %13 = vector.load %arg5[%c0_12, %c0_13] : memref<1x128xf32, #tpu.memory_space<vmem>>, vector<1x128xf32>
      %14 = vector.broadcast %13 : vector<1x128xf32> to vector<16x128xf32>
      %15 = arith.addf %12, %14 : vector<16x128xf32>
      %cst_14 = arith.constant 0.000000e+00 : f32
      %16 = vector.broadcast %cst_14 : f32 to vector<16x128xf32>
      %17 = arith.maximumf %15, %16 : vector<16x128xf32>
      %18 = arith.truncf %17 : vector<16x128xf32> to vector<16x128xbf16>
      %c0_15 = arith.constant 0 : index
      %c0_16 = arith.constant 0 : index
      %19 = vector.load %arg6[%c0_15, %c0_16] : memref<16x128xbf16, #tpu.memory_space<vmem>>, vector<16x128xbf16>
      tpu.vector_store %arg6[%c0_15, %c0_16], %18 {strides = array<i32>} : memref<16x128xbf16, #tpu.memory_space<vmem>>, vector<16x128xbf16>,
    } else {
    }
    return
  }
  func.func @transform_0(%arg0: i32, %arg1: i32, %arg2: i32) -> (i32, i32) {
    %c0_i32 = arith.constant 0 : i32
    return %arg0, %arg2 : i32, i32
  }
  func.func @transform_1(%arg0: i32, %arg1: i32, %arg2: i32) -> (i32, i32) {
    %c0_i32 = arith.constant 0 : i32
    return %arg2, %arg1 : i32, i32
  }
  func.func @transform_2(%arg0: i32, %arg1: i32, %arg2: i32) -> (i32, i32) {
    %c0_i32 = arith.constant 0 : i32
    %c0_i32_0 = arith.constant 0 : i32
    return %c0_i32, %arg1 : i32, i32
  }
  func.func @transform_3(%arg0: i32, %arg1: i32, %arg2: i32) -> (i32, i32) {
    %c0_i32 = arith.constant 0 : i32
    return %arg0, %arg1 : i32, i32
  }
}

</mosaic_0001>

<llo_original>
// kernel: tpu_custom_call.1
$region0: #{tpu_custom_call.1}
  #allocation0 [shape = 'u32[]', space=smem, size = 0x4, offset = 0x4, fixed_abs, tag = 'smem constant byte address 0x4 - core index']
  #allocation1 [shape = 'u32[144,128]{1,0:T(1,128)}', space=vmem, size = 0x12000, scoped, tag = 'internal scratch']
  %s0 = inlined_call_operand.hbm [shape: bf16[20,32], index: 0, kind: input, shape index: {}]
  %s1 = inlined_call_operand.hbm [shape: bf16[32,128], index: 1, kind: input, shape index: {}]
  %s2 = inlined_call_operand.vmem [shape: f32[1,128], index: 2, kind: input, shape index: {}]
  %s3 = inlined_call_operand.hbm [shape: bf16[128,128], index: 3, kind: input, shape index: {}]
  %s4 = inlined_call_operand.vmem [shape: f32[1,128], index: 4, kind: input, shape index: {}]
  %s5 = inlined_call_operand.hbm [shape: bf16[128,128], index: 5, kind: input, shape index: {}]
  %s6 = inlined_call_operand.vmem [shape: f32[1,128], index: 6, kind: input, shape index: {}]
  %s7 = inlined_call_operand.hbm [shape: f32[20,128], index: 7, kind: output, shape index: {}]
  %s8 = sld [smem:[#allocation0]]
  $region77: #{tpu_custom_call.1} parent=0
    _
  %s10 = ssub.s32 1, %s8
  %s11 = scalar_select 0, %s10, %s8
  $region1: #{tpu_custom_call.1} parent=0
    #allocation2 [shape = 'u8[8192]{0}', space=vmem, size = 0x2000, scoped, tag = 'input window, operand 0']
    #allocation3 [shape = 's32[2]{0}', space=sflag, size = 0x8, scoped, tag = 'scoped memory for tpu_custom_call.1']
    #allocation4 [shape = 's32[2]{0}', space=sflag, size = 0x8, scoped, tag = 'scoped memory for tpu_custom_call.1']
    #allocation5 [shape = 'u8[8192]{0}', space=vmem, size = 0x2000, scoped, tag = 'input window, operand 1, single buffered']
    #allocation6 [shape = 's32[1]{0}', space=sflag, size = 0x4, scoped, tag = 'scoped memory for tpu_custom_call.1']
    #allocation7 [shape = 'u8[32768]{0}', space=vmem, size = 0x8000, scoped, tag = 'input window, operand 3, single buffered']
    #allocation8 [shape = 'u8[32768]{0}', space=vmem, size = 0x8000, scoped, tag = 'input window, operand 5, single buffered']
    #allocation9 [shape = 's32[1]{0}', space=sflag, size = 0x4, scoped, tag = 'scoped memory for tpu_custom_call.1']
    #allocation10 [shape = 'u8[16384]{0}', space=vmem, size = 0x4000, scoped, tag = 'output window, operand 0']
    %12 = vsyncpa [#allocation3], 0
    %s13 = scalar_lea.sflag [#allocation3], 1
    %14 = vsyncpa %s13, 0
    %15 = vsyncpa [#allocation6], 0
    %16 = vsyncpa [#allocation9], 0
    %17 = vsyncpa [#allocation4], 0
    %s18 = scalar_lea.sflag [#allocation4], 1
    %19 = vsyncpa %s18, 0
    loop: start=0, step=1, limit=4
    $region2: #{tpu_custom_call.1} parent=1 // loop_pre_header
      _
    $region3: #{tpu_custom_call.1} parent=1 // loop_header
      %s21 = sphi 0, %s25
      %p22 = scmp.ge.s32.totalorder %s21, 4
      %s31 = sphi 0, %s33
      %s34 = sphi 0, %s31
      %s35 = sphi 0, %s34
      %s51 = sphi 0, %s35
      %s55 = sphi 0, %s55
      %s57 = sphi 0, %s55
      %s58 = sphi 0, %s57
      %s72 = sphi 0, %s58
      %s76 = sphi 0, %s76
      %s78 = sphi 0, %s76
      %s79 = sphi 0, %s78
      %s93 = sphi 0, %s79
      %s97 = sphi 0, %s97
      %s99 = sphi 0, %s97
      %s100 = sphi 0, %s99
      %s114 = sphi 0, %s100
      %s118 = sphi 0, %s118
      %s120 = sphi 0, %s118
      %s121 = sphi 0, %s120
      %s135 = sphi 0, %s121
      %s139 = sphi 0, %s139
      %s141 = sphi 0, %s139
      %s142 = sphi 0, %s141
      %s156 = sphi 0, %s142
      %s160 = sphi 0, %s160
      %s162 = sphi 0, %s160
      %s163 = sphi 0, %s162
      %s177 = sphi 0, %s163
      %s183 = sphi 0, %s185
      %s186 = sphi 0, %s183
      %s187 = sphi 0, %s186
      %s203 = sphi 0, %s187
    $region4: #{tpu_custom_call.1} parent=1 // loop_header_branch
      %24 = sbr.rel (%p22) target = $region8
    $region5: #{tpu_custom_call.1} parent=1 // loop_body
      %s26 = ssub.s32 %s21, 1
      %s27 = ssub.s32 %s21, 2
      %s28 = sadd.s32 %s21, 1
      %s29 = ssub.s32 %s21, %s28
      %p30 = scmp.eq.s32.totalorder %s29, 0
      %s32 = sadd.s32 %s31, 1
      %s33 = scalar_select %p30, %s31, %s32
      %p36 = pneg %p30
      %p37 = scmp.eq.s32.totalorder %s21, 1
      %p38 = por %p36, %p37
      %p39 = scmp.ne.s32.totalorder %s31, %s34
      %p40 = scmp.eq.s32.totalorder %s21, 0
      %p41 = por %p39, %p40
      %p42 = scmp.ne.s32.totalorder %s31, %s34
      %p43 = scmp.eq.s32.totalorder %s26, 1
      %p44 = por %p42, %p43
      %p45 = scmp.ne.s32.totalorder %s34, %s35
      %p46 = scmp.eq.s32.totalorder %s26, 0
      %p47 = por %p45, %p46
      %p48 = scmp.ne.s32.totalorder %s34, %s35
      %p49 = scmp.eq.s32.totalorder %s27, 1
      %p50 = por %p48, %p49
      %p52 = scmp.ne.s32.totalorder %s35, %s51
      %p53 = scmp.eq.s32.totalorder %s27, 0
      %p54 = por %p52, %p53
      %s56 = sadd.s32 %s55, 1
      %p59 = scmp.eq.s32.totalorder %s21, 1
      %p60 = scmp.ne.s32.totalorder %s55, %s57
      %p61 = scmp.eq.s32.totalorder %s21, 0
      %p62 = por %p60, %p61
      %p63 = scmp.ne.s32.totalorder %s55, %s57
      %p64 = scmp.eq.s32.totalorder %s26, 1
      %p65 = por %p63, %p64
      %p66 = scmp.ne.s32.totalorder %s57, %s58
      %p67 = scmp.eq.s32.totalorder %s26, 0
      %p68 = por %p66, %p67
      %p69 = scmp.ne.s32.totalorder %s57, %s58
      %p70 = scmp.eq.s32.totalorder %s27, 1
      %p71 = por %p69, %p70
      %p73 = scmp.ne.s32.totalorder %s58, %s72
      %p74 = scmp.eq.s32.totalorder %s27, 0
      %p75 = por %p73, %p74
      %s77 = sadd.s32 %s76, 1
      %p80 = scmp.eq.s32.totalorder %s21, 1
      %p81 = scmp.ne.s32.totalorder %s76, %s78
      %p82 = scmp.eq.s32.totalorder %s21, 0
      %p83 = por %p81, %p82
      %p84 = scmp.ne.s32.totalorder %s76, %s78
      %p85 = scmp.eq.s32.totalorder %s26, 1
      %p86 = por %p84, %p85
      %p87 = scmp.ne.s32.totalorder %s78, %s79
      %p88 = scmp.eq.s32.totalorder %s26, 0
      %p89 = por %p87, %p88
      %p90 = scmp.ne.s32.totalorder %s78, %s79
      %p91 = scmp.eq.s32.totalorder %s27, 1
      %p92 = por %p90, %p91
      %p94 = scmp.ne.s32.totalorder %s79, %s93
      %p95 = scmp.eq.s32.totalorder %s27, 0
      %p96 = por %p94, %p95
      %s98 = sadd.s32 %s97, 1
      %p101 = scmp.eq.s32.totalorder %s21, 1
      %p102 = scmp.ne.s32.totalorder %s97, %s99
      %p103 = scmp.eq.s32.totalorder %s21, 0
      %p104 = por %p102, %p103
      %p105 = scmp.ne.s32.totalorder %s97, %s99
      %p106 = scmp.eq.s32.totalorder %s26, 1
      %p107 = por %p105, %p106
      %p108 = scmp.ne.s32.totalorder %s99, %s100
      %p109 = scmp.eq.s32.totalorder %s26, 0
      %p110 = por %p108, %p109
      %p111 = scmp.ne.s32.totalorder %s99, %s100
      %p112 = scmp.eq.s32.totalorder %s27, 1
      %p113 = por %p111, %p112
      %p115 = scmp.ne.s32.totalorder %s100, %s114
      %p116 = scmp.eq.s32.totalorder %s27, 0
      %p117 = por %p115, %p116
      %s119 = sadd.s32 %s118, 1
      %p122 = scmp.eq.s32.totalorder %s21, 1
      %p123 = scmp.ne.s32.totalorder %s118, %s120
      %p124 = scmp.eq.s32.totalorder %s21, 0
      %p125 = por %p123, %p124
      %p126 = scmp.ne.s32.totalorder %s118, %s120
      %p127 = scmp.eq.s32.totalorder %s26, 1
      %p128 = por %p126, %p127
      %p129 = scmp.ne.s32.totalorder %s120, %s121
      %p130 = scmp.eq.s32.totalorder %s26, 0
      %p131 = por %p129, %p130
      %p132 = scmp.ne.s32.totalorder %s120, %s121
      %p133 = scmp.eq.s32.totalorder %s27, 1
      %p134 = por %p132, %p133
      %p136 = scmp.ne.s32.totalorder %s121, %s135
      %p137 = scmp.eq.s32.totalorder %s27, 0
      %p138 = por %p136, %p137
      %s140 = sadd.s32 %s139, 1
      %p143 = scmp.eq.s32.totalorder %s21, 1
      %p144 = scmp.ne.s32.totalorder %s139, %s141
      %p145 = scmp.eq.s32.totalorder %s21, 0
      %p146 = por %p144, %p145
      %p147 = scmp.ne.s32.totalorder %s139, %s141
      %p148 = scmp.eq.s32.totalorder %s26, 1
      %p149 = por %p147, %p148
      %p150 = scmp.ne.s32.totalorder %s141, %s142
      %p151 = scmp.eq.s32.totalorder %s26, 0
      %p152 = por %p150, %p151
      %p153 = scmp.ne.s32.totalorder %s141, %s142
      %p154 = scmp.eq.s32.totalorder %s27, 1
      %p155 = por %p153, %p154
      %p157 = scmp.ne.s32.totalorder %s142, %s156
      %p158 = scmp.eq.s32.totalorder %s27, 0
      %p159 = por %p157, %p158
      %s161 = sadd.s32 %s160, 1
      %p164 = scmp.eq.s32.totalorder %s21, 1
      %p165 = scmp.ne.s32.totalorder %s160, %s162
      %p166 = scmp.eq.s32.totalorder %s21, 0
      %p167 = por %p165, %p166
      %p168 = scmp.ne.s32.totalorder %s160, %s162
      %p169 = scmp.eq.s32.totalorder %s26, 1
      %p170 = por %p168, %p169
      %p171 = scmp.ne.s32.totalorder %s162, %s163
      %p172 = scmp.eq.s32.totalorder %s26, 0
      %p173 = por %p171, %p172
      %p174 = scmp.ne.s32.totalorder %s162, %s163
      %p175 = scmp.eq.s32.totalorder %s27, 1
      %p176 = por %p174, %p175
      %p178 = scmp.ne.s32.totalorder %s163, %s177
      %p179 = scmp.eq.s32.totalorder %s27, 0
      %p180 = por %p178, %p179
      %s181 = ssub.s32 %s21, %s28
      %p182 = scmp.eq.s32.totalorder %s181, 0
      %s184 = sadd.s32 %s183, 1
      %s185 = scalar_select %p182, %s183, %s184
      %p188 = pneg %p182
      %p189 = scmp.eq.s32.totalorder %s21, 1
      %p190 = por %p188, %p189
      %p191 = scmp.ne.s32.totalorder %s183, %s186
      %p192 = scmp.eq.s32.totalorder %s21, 0
      %p193 = por %p191, %p192
      %p194 = scmp.ne.s32.totalorder %s183, %s186
      %p195 = scmp.eq.s32.totalorder %s26, 1
      %p196 = por %p194, %p195
      %p197 = scmp.ne.s32.totalorder %s186, %s187
      %p198 = scmp.eq.s32.totalorder %s26, 0
      %p199 = por %p197, %p198
      %p200 = scmp.ne.s32.totalorder %s186, %s187
      %p201 = scmp.eq.s32.totalorder %s27, 1
      %p202 = por %p200, %p201
      %p204 = scmp.ne.s32.totalorder %s187, %s203
      %p205 = scmp.eq.s32.totalorder %s27, 0
      %p206 = por %p204, %p205
      %p207 = scmp.le.s32.totalorder 1, %s21
      %p208 = scmp.lt.s32.totalorder %s21, 3
      %p209 = pnand %p207, %p208
      %p210 = pneg %p209
      // Predicated region
      $region9: #{tpu_custom_call.1} parent=5 // pred_check
        _
      $region10: #{tpu_custom_call.1} parent=5 // pred_check_branch
        %212 = sbr.rel (%p209) target = $region12
      $region11: #{tpu_custom_call.1} parent=5 // pred_region
        %s213 = ssub.s32 %s21, 1
        // Predicated region
        $region13: #{tpu_custom_call.1} parent=11 // pred_check
          %p214 = pneg %p68
        $region14: #{tpu_custom_call.1} parent=11 // pred_check_branch
          %216 = sbr.rel (%p214) target = $region16
        $region15: #{tpu_custom_call.1} parent=11 // pred_region
          %s218 = ssub.s32 256, 256
          %219 = vsyncadd [#allocation6], %s218
          %s220 = sshll.u32 [#allocation5], 4
          %s221 = int_to_ptr.vmem [resolvable:$true] %s220
          %226 = dma.hbm_to_vmem [thread:$0]  %s1, 256, %s221, [#allocation6], 64, 64, 4
        $region16: #{tpu_custom_call.1} parent=11 // pred_fallthru
          _
        // Predicated region
        $region17: #{tpu_custom_call.1} parent=11 // pred_check
          %p227 = pneg %p89
        $region18: #{tpu_custom_call.1} parent=11 // pred_check_branch
          %229 = sbr.rel (%p227) target = $region20
        $region19: #{tpu_custom_call.1} parent=11 // pred_region
          _
        $region20: #{tpu_custom_call.1} parent=11 // pred_fallthru
          _
        // Predicated region
        $region21: #{tpu_custom_call.1} parent=11 // pred_check
          %p230 = pneg %p110
        $region22: #{tpu_custom_call.1} parent=11 // pred_check_branch
          %232 = sbr.rel (%p230) target = $region24
        $region23: #{tpu_custom_call.1} parent=11 // pred_region
          %s234 = ssub.s32 1024, 1024
          %235 = vsyncadd [#allocation6], %s234
          %s236 = sshll.u32 [#allocation7], 4
          %s237 = int_to_ptr.vmem [resolvable:$true] %s236
          %242 = dma.hbm_to_vmem [thread:$0]  %s3, 1024, %s237, [#allocation6], 64, 64, 4
        $region24: #{tpu_custom_call.1} parent=11 // pred_fallthru
          _
        // Predicated region
        $region25: #{tpu_custom_call.1} parent=11 // pred_check
          %p243 = pneg %p131
        $region26: #{tpu_custom_call.1} parent=11 // pred_check_branch
          %245 = sbr.rel (%p243) target = $region28
        $region27: #{tpu_custom_call.1} parent=11 // pred_region
          _
        $region28: #{tpu_custom_call.1} parent=11 // pred_fallthru
          _
        // Predicated region
        $region29: #{tpu_custom_call.1} parent=11 // pred_check
          %p246 = pneg %p152
        $region30: #{tpu_custom_call.1} parent=11 // pred_check_branch
          %248 = sbr.rel (%p246) target = $region32
        $region31: #{tpu_custom_call.1} parent=11 // pred_region
          %s250 = ssub.s32 1024, 1024
          %251 = vsyncadd [#allocation9], %s250
          %s252 = sshll.u32 [#allocation8], 4
          %s253 = int_to_ptr.vmem [resolvable:$true] %s252
          %258 = dma.hbm_to_vmem [thread:$0]  %s5, 1024, %s253, [#allocation9], 64, 64, 4
        $region32: #{tpu_custom_call.1} parent=11 // pred_fallthru
          _
        // Predicated region
        $region33: #{tpu_custom_call.1} parent=11 // pred_check
          %p259 = pneg %p173
        $region34: #{tpu_custom_call.1} parent=11 // pred_check_branch
          %261 = sbr.rel (%p259) target = $region36
        $region35: #{tpu_custom_call.1} parent=11 // pred_region
          _
        $region36: #{tpu_custom_call.1} parent=11 // pred_fallthru
          _
      $region12: #{tpu_custom_call.1} parent=5 // pred_fallthru
        _
      %p262 = scmp.lt.s32.totalorder %s21, 2
      // Predicated region
      $region37: #{tpu_custom_call.1} parent=5 // pred_check
        %p263 = pneg %p262
      $region38: #{tpu_custom_call.1} parent=5 // pred_check_branch
        %265 = sbr.rel (%p263) target = $region40
      $region39: #{tpu_custom_call.1} parent=5 // pred_region
        // Predicated region
        $region41: #{tpu_custom_call.1} parent=39 // pred_check
          %p266 = pneg %p41
        $region42: #{tpu_custom_call.1} parent=39 // pred_check_branch
          %268 = sbr.rel (%p266) target = $region44
        $region43: #{tpu_custom_call.1} parent=39 // pred_region
          %s269 = sand.u32 %s31, 1
          %s270 = scalar_lea.sflag [#allocation3], %s269
          %s271 = sand.u32 %s31, 1
          %s272 = smul.addr %s271, 8
          %s273 = scalar_lea.vmem [#allocation2], %s272
          %s274 = smul.u32 2, %s21
          %s275 = ssub.s32 3, %s274
          %p276 = scmp.lt.s32.totalorder %s275, 2
          %s277 = scalar_select %p276, %s275, 2
          %s278 = smul.u32 64, %s277
          %s280 = ssub.s32 128, %s278
          %281 = vsyncadd %s270, %s280
          %p282 = scmp.ne.s32.totalorder 0, %s278
          %s283 = smul.addr %s274, 64
          %s284 = scalar_lea.hbm %s0, %s283
          %s285 = smul.u32 4, %s277
          %s286 = sshll.u32 %s273, 4
          %s287 = int_to_ptr.vmem [resolvable:$true] %s286
          %s288 = sshll.u32 %s285, 4
          %292 = dma.hbm_to_vmem [thread:$0]  (%p282), %s284, %s288, %s287, %s270, 64, 64, 4
        $region44: #{tpu_custom_call.1} parent=39 // pred_fallthru
          _
      $region40: #{tpu_custom_call.1} parent=5 // pred_fallthru
        _
      %p293 = scmp.le.s32.totalorder 1, %s21
      %p294 = scmp.lt.s32.totalorder %s21, 3
      %p295 = pnand %p293, %p294
      %p296 = pneg %p295
      // Predicated region
      $region45: #{tpu_custom_call.1} parent=5 // pred_check
        _
      $region46: #{tpu_custom_call.1} parent=5 // pred_check_branch
        %298 = sbr.rel (%p295) target = $region48
      $region47: #{tpu_custom_call.1} parent=5 // pred_region
        %s299 = ssub.s32 %s21, 1
        %s300 = sand.u32 %s34, 1
        %s301 = scalar_lea.sflag [#allocation3], %s300
        %s302 = sand.u32 %s34, 1
        %s303 = smul.addr %s302, 8
        %s304 = scalar_lea.vmem [#allocation2], %s303
        // Predicated region
        $region49: #{tpu_custom_call.1} parent=47 // pred_check
          %p305 = pneg %p47
        $region50: #{tpu_custom_call.1} parent=47 // pred_check_branch
          %307 = sbr.rel (%p305) target = $region52
        $region51: #{tpu_custom_call.1} parent=47 // pred_region
          %308 = dma.done %s301, 128
        $region52: #{tpu_custom_call.1} parent=47 // pred_fallthru
          _
        // Predicated region
        $region53: #{tpu_custom_call.1} parent=47 // pred_check
          %p309 = pneg %p68
        $region54: #{tpu_custom_call.1} parent=47 // pred_check_branch
          %311 = sbr.rel (%p309) target = $region56
        $region55: #{tpu_custom_call.1} parent=47 // pred_region
          %312 = dma.done [#allocation6], 256
        $region56: #{tpu_custom_call.1} parent=47 // pred_fallthru
          _
        // Predicated region
        $region57: #{tpu_custom_call.1} parent=47 // pred_check
          %p313 = pneg %p110
        $region58: #{tpu_custom_call.1} parent=47 // pred_check_branch
          %315 = sbr.rel (%p313) target = $region60
        $region59: #{tpu_custom_call.1} parent=47 // pred_region
          %316 = dma.done [#allocation6], 1024
        $region60: #{tpu_custom_call.1} parent=47 // pred_fallthru
          _
        // Predicated region
        $region61: #{tpu_custom_call.1} parent=47 // pred_check
          %p317 = pneg %p152
        $region62: #{tpu_custom_call.1} parent=47 // pred_check_branch
          %319 = sbr.rel (%p317) target = $region64
        $region63: #{tpu_custom_call.1} parent=47 // pred_region
          %320 = dma.done [#allocation9], 1024
        $region64: #{tpu_custom_call.1} parent=47 // pred_fallthru
          _
        %s321 = sand.u32 %s34, 1
        %s322 = scalar_lea.sflag [#allocation3], %s321
        %s323 = sand.u32 %s34, 1
        %s324 = smul.addr %s323, 8
        %s325 = scalar_lea.vmem [#allocation2], %s324
        %p326 = pneg %p47
        %p327 = pneg %p44
        %p328 = pneg %p68
        %p329 = pneg %p65
        %p330 = pneg %p89
        %p331 = pneg %p86
        %p332 = pneg %p110
        %p333 = pneg %p107
        %p334 = pneg %p131
        %p335 = pneg %p128
        %p336 = pneg %p152
        %p337 = pneg %p149
        %p338 = pneg %p173
        %p339 = pneg %p170
        %p340 = pneg %p199
        %p341 = pneg %p196
        %s342 = sand.u32 %s186, 1
        %s343 = scalar_lea.sflag [#allocation4], %s342
        %s344 = sand.u32 %s186, 1
        %s345 = smul.addr %s344, 16
        %s346 = scalar_lea.vmem [#allocation10], %s345
        %s347 = smul.u32 2, %s26
        %s348 = ssub.s32 3, %s347
        %p349 = scmp.lt.s32.totalorder %s348, 2
        %s350 = scalar_select %p349, %s348, 2
        %s351 = smul.u32 64, %s350
        %s352 = smul.u32 2, %s26
        %s353 = ssub.s32 3, %s352
        %p354 = scmp.lt.s32.totalorder %s353, 2
        %s355 = scalar_select %p354, %s353, 2
        %s356 = smul.u32 128, %s355
        %v358 = vld [vmem:[%s304] sm:$0xf]
        %v359 = vld [vmem:[%s304 + $0x4] sm:$0xf]
        %v360 = vld [vmem:[#allocation5] sm:$0xf]
        %v361 = vld [vmem:[#allocation5 + $0x4] sm:$0xf]
        %v362 = vld [vmem:[#allocation5 + $0x8] sm:$0xf]
        %v363 = vld [vmem:[#allocation5 + $0xc] sm:$0xf]
        %v364 = vld [vmem:[%s2] sm:$0x1]
        %v366 = vlaneseq
        %v367 = vshrl.u32 %v366, 7
        %v368 = vsub.s32 0, %v367
        %v369 = vrot.slane %v364, %v368
        %v373 = vunpack.c.l.b16 %v358
        %v374 = vunpack.c.l.b16 %v359
        %v375 = vpack.c.b16 %v374, %v373
        %v380 = vunpack.c.l.b16 %v360
        %v381 = vunpack.c.l.b16 %v361
        %v382 = vunpack.c.l.b16 %v362
        %v383 = vunpack.c.l.b16 %v363
        %v384 = vpack.c.b16 %v381, %v380
        %v385 = vpack.c.b16 %v383, %v382
        %vm388 = vcmask 261120
        %v390 = vsel %vm388, %v375, 0
        %392 = vmatprep.subr.bf16.mxu0 0
        %393 = vmatpush1.bf16.msra.mxu0 0
        %394 = vmatprep.subr.bf16.mxu0 0
        %395 = vmatpush1.bf16.msra.mxu0 0
        %396 = vmatprep.subr.bf16.mxu0 0
        %397 = vmatpush1.bf16.msra.mxu0 0
        %398 = vmatprep.subr.bf16.mxu0 0
        %399 = vmatpush1.bf16.msra.mxu0 0
        %400 = vmatprep.subr.bf16.mxu0 0
        %401 = vmatpush1.bf16.msra.mxu0 0
        %402 = vmatprep.subr.bf16.mxu0 0
        %403 = vmatpush1.bf16.msra.mxu0 0
        %404 = vmatprep.subr.bf16.mxu0 0
        %405 = vmatpush1.bf16.msra.mxu0 %v385
        %406 = vmatprep.subr.bf16.mxu0 0
        %407 = vmatpush1.bf16.msra.mxu0 %v384
        %408 = vmatprep.subr.bf16.mxu0 0
        %409 = vmatpush2.bf16.msra.mxu0 0
        %410 = vmatprep.subr.bf16.mxu0 0
        %411 = vmatpush2.bf16.msra.mxu0 0
        %412 = vmatprep.subr.bf16.mxu0 0
        %413 = vmatpush2.bf16.msra.mxu0 0
        %414 = vmatprep.subr.bf16.mxu0 0
        %415 = vmatpush2.bf16.msra.mxu0 0
        %416 = vmatprep.subr.bf16.mxu0 0
        %417 = vmatpush2.bf16.msra.mxu0 0
        %418 = vmatprep.subr.bf16.mxu0 0
        %419 = vmatpush2.bf16.msra.mxu0 0
        %420 = vmatprep.subr.bf16.mxu0 0
        %421 = vmatpush2.bf16.msra.mxu0 0
        %422 = vmatprep.subr.bf16.mxu0 0
        %423 = vmatpush2.bf16.msra.mxu0 0
        %424 = vmatprep.mubr.bf16.mxu0 0
        %425 = vmatmul.mubr.bf16.gmra.mxu0 %v390
        %v426 = vpop.f32.mrf.mxu0
        %v427 = vadd.f32 %v369, %v426
        %v428 = vpop.f32.mrf.mxu0
        %v429 = vpop.f32.mrf.mxu0
        %v430 = vadd.f32 %v369, %v429
        %v431 = vpop.f32.mrf.mxu0
        %432 = vdwg.mxu0
        %v433 = vmax.f32 %v427, 0.0
        %v434 = vmax.f32 %v430, 0.0
        %v435 = vpack.c.bf16 %v434, %v433
        %v436 = vld [vmem:[#allocation7] sm:$0xf]
        %v437 = vld [vmem:[#allocation7 + $0x4] sm:$0xf]
        %v438 = vld [vmem:[#allocation7 + $0x8] sm:$0xf]
        %v439 = vld [vmem:[#allocation7 + $0xc] sm:$0xf]
        %v440 = vld [vmem:[#allocation7 + $0x10] sm:$0xf]
        %v441 = vld [vmem:[#allocation7 + $0x14] sm:$0xf]
        %v442 = vld [vmem:[#allocation7 + $0x18] sm:$0xf]
        %v443 = vld [vmem:[#allocation7 + $0x1c] sm:$0xf]
        %v444 = vld [vmem:[#allocation7 + $0x20] sm:$0xf]
        %v445 = vld [vmem:[#allocation7 + $0x24] sm:$0xf]
        %v446 = vld [vmem:[#allocation7 + $0x28] sm:$0xf]
        %v447 = vld [vmem:[#allocation7 + $0x2c] sm:$0xf]
        %v448 = vld [vmem:[#allocation7 + $0x30] sm:$0xf]
        %v449 = vld [vmem:[#allocation7 + $0x34] sm:$0xf]
        %v450 = vld [vmem:[#allocation7 + $0x38] sm:$0xf]
        %v451 = vld [vmem:[#allocation7 + $0x3c] sm:$0xf]
        %v452 = vld [vmem:[%s4] sm:$0x1]
        %v454 = vlaneseq
        %v455 = vshrl.u32 %v454, 7
        %v456 = vsub.s32 0, %v455
        %v457 = vrot.slane %v452, %v456
        %v475 = vunpack.c.l.b16 %v436
        %v476 = vunpack.c.l.b16 %v437
        %v477 = vunpack.c.l.b16 %v438
        %v478 = vunpack.c.l.b16 %v439
        %v479 = vunpack.c.l.b16 %v440
        %v480 = vunpack.c.l.b16 %v441
        %v481 = vunpack.c.l.b16 %v442
        %v482 = vunpack.c.l.b16 %v443
        %v483 = vunpack.c.l.b16 %v444
        %v484 = vunpack.c.l.b16 %v445
        %v485 = vunpack.c.l.b16 %v446
        %v486 = vunpack.c.l.b16 %v447
        %v487 = vunpack.c.l.b16 %v448
        %v488 = vunpack.c.l.b16 %v449
        %v489 = vunpack.c.l.b16 %v450
        %v490 = vunpack.c.l.b16 %v451
        %v491 = vpack.c.b16 %v476, %v475
        %v492 = vpack.c.b16 %v478, %v477
        %v493 = vpack.c.b16 %v480, %v479
        %v494 = vpack.c.b16 %v482, %v481
        %v495 = vpack.c.b16 %v484, %v483
        %v496 = vpack.c.b16 %v486, %v485
        %v497 = vpack.c.b16 %v488, %v487
        %v498 = vpack.c.b16 %v490, %v489
        %507 = vmatprep.subr.bf16.mxu0 0
        %508 = vmatpush1.bf16.msra.mxu0 %v498
        %509 = vmatprep.subr.bf16.mxu0 0
        %510 = vmatpush1.bf16.msra.mxu0 %v497
        %511 = vmatprep.subr.bf16.mxu0 0
        %512 = vmatpush1.bf16.msra.mxu0 %v496
        %513 = vmatprep.subr.bf16.mxu0 0
        %514 = vmatpush1.bf16.msra.mxu0 %v495
        %515 = vmatprep.subr.bf16.mxu0 0
        %516 = vmatpush1.bf16.msra.mxu0 %v494
        %517 = vmatprep.subr.bf16.mxu0 0
        %518 = vmatpush1.bf16.msra.mxu0 %v493
        %519 = vmatprep.subr.bf16.mxu0 0
        %520 = vmatpush1.bf16.msra.mxu0 %v492
        %521 = vmatprep.subr.bf16.mxu0 0
        %522 = vmatpush1.bf16.msra.mxu0 %v491
        %523 = vmatprep.subr.bf16.mxu0 0
        %524 = vmatpush2.bf16.msra.mxu0 0
        %525 = vmatprep.subr.bf16.mxu0 0
        %526 = vmatpush2.bf16.msra.mxu0 0
        %527 = vmatprep.subr.bf16.mxu0 0
        %528 = vmatpush2.bf16.msra.mxu0 0
        %529 = vmatprep.subr.bf16.mxu0 0
        %530 = vmatpush2.bf16.msra.mxu0 0
        %531 = vmatprep.subr.bf16.mxu0 0
        %532 = vmatpush2.bf16.msra.mxu0 0
        %533 = vmatprep.subr.bf16.mxu0 0
        %534 = vmatpush2.bf16.msra.mxu0 0
        %535 = vmatprep.subr.bf16.mxu0 0
        %536 = vmatpush2.bf16.msra.mxu0 0
        %537 = vmatprep.subr.bf16.mxu0 0
        %538 = vmatpush2.bf16.msra.mxu0 0
        %539 = vmatprep.mubr.bf16.mxu0 0
        %540 = vmatmul.mubr.bf16.gmra.mxu0 %v435
        %v541 = vpop.f32.mrf.mxu0
        %v542 = vadd.f32 %v457, %v541
        %v543 = vpop.f32.mrf.mxu0
        %v544 = vpop.f32.mrf.mxu0
        %v545 = vadd.f32 %v457, %v544
        %v546 = vpop.f32.mrf.mxu0
        %547 = vdwg.mxu0
        %v548 = vmax.f32 %v542, 0.0
        %v549 = vmax.f32 %v545, 0.0
        %v550 = vpack.c.bf16 %v549, %v548
        %v551 = vld [vmem:[#allocation8] sm:$0xf]
        %v552 = vld [vmem:[#allocation8 + $0x4] sm:$0xf]
        %v553 = vld [vmem:[#allocation8 + $0x8] sm:$0xf]
        %v554 = vld [vmem:[#allocation8 + $0xc] sm:$0xf]
        %v555 = vld [vmem:[#allocation8 + $0x10] sm:$0xf]
        %v556 = vld [vmem:[#allocation8 + $0x14] sm:$0xf]
        %v557 = vld [vmem:[#allocation8 + $0x18] sm:$0xf]
        %v558 = vld [vmem:[#allocation8 + $0x1c] sm:$0xf]
        %v559 = vld [vmem:[#allocation8 + $0x20] sm:$0xf]
        %v560 = vld [vmem:[#allocation8 + $0x24] sm:$0xf]
        %v561 = vld [vmem:[#allocation8 + $0x28] sm:$0xf]
        %v562 = vld [vmem:[#allocation8 + $0x2c] sm:$0xf]
        %v563 = vld [vmem:[#allocation8 + $0x30] sm:$0xf]
        %v564 = vld [vmem:[#allocation8 + $0x34] sm:$0xf]
        %v565 = vld [vmem:[#allocation8 + $0x38] sm:$0xf]
        %v566 = vld [vmem:[#allocation8 + $0x3c] sm:$0xf]
        %v567 = vld [vmem:[%s6] sm:$0x1]
        %v569 = vlaneseq
        %v570 = vshrl.u32 %v569, 7
        %v571 = vsub.s32 0, %v570
        %v572 = vrot.slane %v567, %v571
        %v590 = vunpack.c.l.b16 %v551
        %v591 = vunpack.c.l.b16 %v552
        %v592 = vunpack.c.l.b16 %v553
        %v593 = vunpack.c.l.b16 %v554
        %v594 = vunpack.c.l.b16 %v555
        %v595 = vunpack.c.l.b16 %v556
        %v596 = vunpack.c.l.b16 %v557
        %v597 = vunpack.c.l.b16 %v558
        %v598 = vunpack.c.l.b16 %v559
        %v599 = vunpack.c.l.b16 %v560
        %v600 = vunpack.c.l.b16 %v561
        %v601 = vunpack.c.l.b16 %v562
        %v602 = vunpack.c.l.b16 %v563
        %v603 = vunpack.c.l.b16 %v564
        %v604 = vunpack.c.l.b16 %v565
        %v605 = vunpack.c.l.b16 %v566
        %v606 = vpack.c.b16 %v591, %v590
        %v607 = vpack.c.b16 %v593, %v592
        %v608 = vpack.c.b16 %v595, %v594
        %v609 = vpack.c.b16 %v597, %v596
        %v610 = vpack.c.b16 %v599, %v598
        %v611 = vpack.c.b16 %v601, %v600
        %v612 = vpack.c.b16 %v603, %v602
        %v613 = vpack.c.b16 %v605, %v604
        %622 = vmatprep.subr.bf16.mxu0 0
        %623 = vmatpush1.bf16.msra.mxu0 %v613
        %624 = vmatprep.subr.bf16.mxu0 0
        %625 = vmatpush1.bf16.msra.mxu0 %v612
        %626 = vmatprep.subr.bf16.mxu0 0
        %627 = vmatpush1.bf16.msra.mxu0 %v611
        %628 = vmatprep.subr.bf16.mxu0 0
        %629 = vmatpush1.bf16.msra.mxu0 %v610
        %630 = vmatprep.subr.bf16.mxu0 0
        %631 = vmatpush1.bf16.msra.mxu0 %v609
        %632 = vmatprep.subr.bf16.mxu0 0
        %633 = vmatpush1.bf16.msra.mxu0 %v608
        %634 = vmatprep.subr.bf16.mxu0 0
        %635 = vmatpush1.bf16.msra.mxu0 %v607
        %636 = vmatprep.subr.bf16.mxu0 0
        %637 = vmatpush1.bf16.msra.mxu0 %v606
        %638 = vmatprep.subr.bf16.mxu0 0
        %639 = vmatpush2.bf16.msra.mxu0 0
        %640 = vmatprep.subr.bf16.mxu0 0
        %641 = vmatpush2.bf16.msra.mxu0 0
        %642 = vmatprep.subr.bf16.mxu0 0
        %643 = vmatpush2.bf16.msra.mxu0 0
        %644 = vmatprep.subr.bf16.mxu0 0
        %645 = vmatpush2.bf16.msra.mxu0 0
        %646 = vmatprep.subr.bf16.mxu0 0
        %647 = vmatpush2.bf16.msra.mxu0 0
        %648 = vmatprep.subr.bf16.mxu0 0
        %649 = vmatpush2.bf16.msra.mxu0 0
        %650 = vmatprep.subr.bf16.mxu0 0
        %651 = vmatpush2.bf16.msra.mxu0 0
        %652 = vmatprep.subr.bf16.mxu0 0
        %653 = vmatpush2.bf16.msra.mxu0 0
        %654 = vmatprep.mubr.bf16.mxu0 0
        %655 = vmatmul.mubr.bf16.gmra.mxu0 %v550
        %v656 = vpop.f32.mrf.mxu0
        %v657 = vadd.f32 %v572, %v656
        %v658 = vpop.f32.mrf.mxu0
        %v659 = vpop.f32.mrf.mxu0
        %v660 = vadd.f32 %v572, %v659
        %v661 = vpop.f32.mrf.mxu0
        %662 = vdwg.mxu0
        %663 = vst [vmem:[%s346] sm:$0xff] %v657
        %664 = vst [vmem:[%s346 + $0x8] sm:$0xff] %v660
        %s665 = sand.u32 %s186, 1
        %s666 = scalar_lea.sflag [#allocation4], %s665
        %s667 = sand.u32 %s186, 1
        %s668 = smul.addr %s667, 16
        %s669 = scalar_lea.vmem [#allocation10], %s668
        // Predicated region
        $region65: #{tpu_custom_call.1} parent=47 // pred_check
          %p670 = pneg %p196
        $region66: #{tpu_custom_call.1} parent=47 // pred_check_branch
          %672 = sbr.rel (%p670) target = $region68
        $region67: #{tpu_custom_call.1} parent=47 // pred_region
          %s673 = smul.u32 2, %s26
          %s674 = ssub.s32 3, %s673
          %p675 = scmp.lt.s32.totalorder %s674, 2
          %s676 = scalar_select %p675, %s674, 2
          %s677 = smul.u32 128, %s676
          %s679 = ssub.s32 256, %s677
          %680 = vsyncadd %s666, %s679
          %p681 = scmp.ne.s32.totalorder 0, %s677
          %s682 = smul.addr %s673, 128
          %s683 = scalar_lea.hbm %s7, %s682
          %s684 = smul.u32 8, %s676
          %s685 = sshll.u32 %s669, 4
          %s686 = int_to_ptr.vmem [resolvable:$true] %s685
          %s687 = sshll.u32 %s684, 4
          %691 = dma.vmem_to_hbm [thread:$0]  (%p681), %s686, %s687, %s683, %s666, 128, 128, 8
        $region68: #{tpu_custom_call.1} parent=47 // pred_fallthru
          _
      $region48: #{tpu_custom_call.1} parent=5 // pred_fallthru
        _
      %p692 = scmp.le.s32.totalorder 2, %s21
      // Predicated region
      $region69: #{tpu_custom_call.1} parent=5 // pred_check
        %p693 = pneg %p692
      $region70: #{tpu_custom_call.1} parent=5 // pred_check_branch
        %695 = sbr.rel (%p693) target = $region72
      $region71: #{tpu_custom_call.1} parent=5 // pred_region
        %s696 = ssub.s32 %s21, 2
        // Predicated region
        $region73: #{tpu_custom_call.1} parent=71 // pred_check
          %p697 = pneg %p202
        $region74: #{tpu_custom_call.1} parent=71 // pred_check_branch
          %699 = sbr.rel (%p697) target = $region76
        $region75: #{tpu_custom_call.1} parent=71 // pred_region
          %s700 = sand.u32 %s187, 1
          %s701 = scalar_lea.sflag [#allocation4], %s700
          %s702 = sand.u32 %s187, 1
          %s703 = smul.addr %s702, 16
          %s704 = scalar_lea.vmem [#allocation10], %s703
          %705 = dma.done %s701, 256
        $region76: #{tpu_custom_call.1} parent=71 // pred_fallthru
          _
      $region72: #{tpu_custom_call.1} parent=5 // pred_fallthru
        _
    $region6: #{tpu_custom_call.1} parent=1 // loop_footer
      %s25 = sadd.s32 1, %s21
    $region7: #{tpu_custom_call.1} parent=1 // loop_footer_branch
      %20 = sbr.rel target = $region3
    $region8: #{tpu_custom_call.1} parent=1 // loop_exit
      _
    %706 = vsyncpa [#allocation3], 1
    %s707 = scalar_lea.sflag [#allocation3], 1
    %708 = vsyncpa %s707, 1
    %709 = vsyncpa [#allocation6], 1
    %710 = vsyncpa [#allocation9], 1
    %711 = vsyncpa [#allocation4], 1
    %s712 = scalar_lea.sflag [#allocation4], 1
    %713 = vsyncpa %s712, 1

// kernel: tpu_custom_call.1
$region0: #{tpu_custom_call.1}
  #allocation0 [shape = 'u32[]', space=smem, size = 0x4, offset = 0x4, fixed_abs, tag = 'smem constant byte address 0x4 - core index']
  #allocation1 [shape = 'u32[144,128]{1,0:T(1,128)}', space=vmem, size = 0x12000, scoped, tag = 'internal scratch']
  %s0 = inlined_call_operand.hbm [shape: bf16[20,32], index: 0, kind: input, shape index: {}]
  %s1 = inlined_call_operand.hbm [shape: bf16[32,128], index: 1, kind: input, shape index: {}]
  %s2 = inlined_call_operand.vmem [shape: f32[1,128], index: 2, kind: input, shape index: {}]
  %s3 = inlined_call_operand.hbm [shape: bf16[128,128], index: 3, kind: input, shape index: {}]
  %s4 = inlined_call_operand.vmem [shape: f32[1,128], index: 4, kind: input, shape index: {}]
  %s5 = inlined_call_operand.hbm [shape: bf16[128,128], index: 5, kind: input, shape index: {}]
  %s6 = inlined_call_operand.vmem [shape: f32[1,128], index: 6, kind: input, shape index: {}]
  %s7 = inlined_call_operand.hbm [shape: f32[20,128], index: 7, kind: output, shape index: {}]
  %s8 = sld [smem:[#allocation0]]
  $region77: #{tpu_custom_call.1} parent=0
    _
  %s10 = ssub.s32 1, %s8
  %s11 = scalar_select 0, %s10, %s8
  $region1: #{tpu_custom_call.1} parent=0
    #allocation2 [shape = 'u8[8192]{0}', space=vmem, size = 0x2000, scoped, tag = 'input window, operand 0']
    #allocation3 [shape = 's32[2]{0}', space=sflag, size = 0x8, scoped, tag = 'scoped memory for tpu_custom_call.1']
    #allocation4 [shape = 's32[2]{0}', space=sflag, size = 0x8, scoped, tag = 'scoped memory for tpu_custom_call.1']
    #allocation5 [shape = 'u8[8192]{0}', space=vmem, size = 0x2000, scoped, tag = 'input window, operand 1, single buffered']
    #allocation6 [shape = 's32[1]{0}', space=sflag, size = 0x4, scoped, tag = 'scoped memory for tpu_custom_call.1']
    #allocation7 [shape = 'u8[32768]{0}', space=vmem, size = 0x8000, scoped, tag = 'input window, operand 3, single buffered']
    #allocation8 [shape = 'u8[32768]{0}', space=vmem, size = 0x8000, scoped, tag = 'input window, operand 5, single buffered']
    #allocation9 [shape = 's32[1]{0}', space=sflag, size = 0x4, scoped, tag = 'scoped memory for tpu_custom_call.1']
    #allocation10 [shape = 'u8[16384]{0}', space=vmem, size = 0x4000, scoped, tag = 'output window, operand 0']
    %12 = vsyncpa [#allocation3], 0
    %s13 = scalar_lea.sflag [#allocation3], 1
    %14 = vsyncpa %s13, 0
    %15 = vsyncpa [#allocation6], 0
    %16 = vsyncpa [#allocation9], 0
    %17 = vsyncpa [#allocation4], 0
    %s18 = scalar_lea.sflag [#allocation4], 1
    %19 = vsyncpa %s18, 0
    loop: start=0, step=1, limit=4
    $region2: #{tpu_custom_call.1} parent=1 // loop_pre_header
      _
    $region3: #{tpu_custom_call.1} parent=1 // loop_header
      %s21 = sphi 0, %s25
      %p22 = scmp.ge.s32.totalorder %s21, 4
      %s31 = sphi 0, %s33
      %s34 = sphi 0, %s31
      %s35 = sphi 0, %s34
      %s51 = sphi 0, %s35
      %s55 = sphi 0, %s55
      %s57 = sphi 0, %s55
      %s58 = sphi 0, %s57
      %s72 = sphi 0, %s58
      %s76 = sphi 0, %s76
      %s78 = sphi 0, %s76
      %s79 = sphi 0, %s78
      %s93 = sphi 0, %s79
      %s97 = sphi 0, %s97
      %s99 = sphi 0, %s97
      %s100 = sphi 0, %s99
      %s114 = sphi 0, %s100
      %s118 = sphi 0, %s118
      %s120 = sphi 0, %s118
      %s121 = sphi 0, %s120
      %s135 = sphi 0, %s121
      %s139 = sphi 0, %s139
      %s141 = sphi 0, %s139
      %s142 = sphi 0, %s141
      %s156 = sphi 0, %s142
      %s160 = sphi 0, %s160
      %s162 = sphi 0, %s160
      %s163 = sphi 0, %s162
      %s177 = sphi 0, %s163
      %s183 = sphi 0, %s185
      %s186 = sphi 0, %s183
      %s187 = sphi 0, %s186
      %s203 = sphi 0, %s187
    $region4: #{tpu_custom_call.1} parent=1 // loop_header_branch
      %24 = sbr.rel (%p22) target = $region8
    $region5: #{tpu_custom_call.1} parent=1 // loop_body
      %s26 = ssub.s32 %s21, 1
      %s27 = ssub.s32 %s21, 2
      %s28 = sadd.s32 %s21, 1
      %s29 = ssub.s32 %s21, %s28
      %p30 = scmp.eq.s32.totalorder %s29, 0
      %s32 = sadd.s32 %s31, 1
      %s33 = scalar_select %p30, %s31, %s32
      %p36 = pneg %p30
      %p37 = scmp.eq.s32.totalorder %s21, 1
      %p38 = por %p36, %p37
      %p39 = scmp.ne.s32.totalorder %s31, %s34
      %p40 = scmp.eq.s32.totalorder %s21, 0
      %p41 = por %p39, %p40
      %p42 = scmp.ne.s32.totalorder %s31, %s34
      %p43 = scmp.eq.s32.totalorder %s26, 1
      %p44 = por %p42, %p43
      %p45 = scmp.ne.s32.totalorder %s34, %s35
      %p46 = scmp.eq.s32.totalorder %s26, 0
      %p47 = por %p45, %p46
      %p48 = scmp.ne.s32.totalorder %s34, %s35
      %p49 = scmp.eq.s32.totalorder %s27, 1
      %p50 = por %p48, %p49
      %p52 = scmp.ne.s32.totalorder %s35, %s51
      %p53 = scmp.eq.s32.totalorder %s27, 0
      %p54 = por %p52, %p53
      %s56 = sadd.s32 %s55, 1
      %p59 = scmp.eq.s32.totalorder %s21, 1
      %p60 = scmp.ne.s32.totalorder %s55, %s57
      %p61 = scmp.eq.s32.totalorder %s21, 0
      %p62 = por %p60, %p61
      %p63 = scmp.ne.s32.totalorder %s55, %s57
      %p64 = scmp.eq.s32.totalorder %s26, 1
      %p65 = por %p63, %p64
      %p66 = scmp.ne.s32.totalorder %s57, %s58
      %p67 = scmp.eq.s32.totalorder %s26, 0
      %p68 = por %p66, %p67
      %p69 = scmp.ne.s32.totalorder %s57, %s58
      %p70 = scmp.eq.s32.totalorder %s27, 1
      %p71 = por %p69, %p70
      %p73 = scmp.ne.s32.totalorder %s58, %s72
      %p74 = scmp.eq.s32.totalorder %s27, 0
      %p75 = por %p73, %p74
      %s77 = sadd.s32 %s76, 1
      %p80 = scmp.eq.s32.totalorder %s21, 1
      %p81 = scmp.ne.s32.totalorder %s76, %s78
      %p82 = scmp.eq.s32.totalorder %s21, 0
      %p83 = por %p81, %p82
      %p84 = scmp.ne.s32.totalorder %s76, %s78
      %p85 = scmp.eq.s32.totalorder %s26, 1
      %p86 = por %p84, %p85
      %p87 = scmp.ne.s32.totalorder %s78, %s79
      %p88 = scmp.eq.s32.totalorder %s26, 0
      %p89 = por %p87, %p88
      %p90 = scmp.ne.s32.totalorder %s78, %s79
      %p91 = scmp.eq.s32.totalorder %s27, 1
      %p92 = por %p90, %p91
      %p94 = scmp.ne.s32.totalorder %s79, %s93
      %p95 = scmp.eq.s32.totalorder %s27, 0
      %p96 = por %p94, %p95
      %s98 = sadd.s32 %s97, 1
      %p101 = scmp.eq.s32.totalorder %s21, 1
      %p102 = scmp.ne.s32.totalorder %s97, %s99
      %p103 = scmp.eq.s32.totalorder %s21, 0
      %p104 = por %p102, %p103
      %p105 = scmp.ne.s32.totalorder %s97, %s99
      %p106 = scmp.eq.s32.totalorder %s26, 1
      %p107 = por %p105, %p106
      %p108 = scmp.ne.s32.totalorder %s99, %s100
      %p109 = scmp.eq.s32.totalorder %s26, 0
      %p110 = por %p108, %p109
      %p111 = scmp.ne.s32.totalorder %s99, %s100
      %p112 = scmp.eq.s32.totalorder %s27, 1
      %p113 = por %p111, %p112
      %p115 = scmp.ne.s32.totalorder %s100, %s114
      %p116 = scmp.eq.s32.totalorder %s27, 0
      %p117 = por %p115, %p116
      %s119 = sadd.s32 %s118, 1
      %p122 = scmp.eq.s32.totalorder %s21, 1
      %p123 = scmp.ne.s32.totalorder %s118, %s120
      %p124 = scmp.eq.s32.totalorder %s21, 0
      %p125 = por %p123, %p124
      %p126 = scmp.ne.s32.totalorder %s118, %s120
      %p127 = scmp.eq.s32.totalorder %s26, 1
      %p128 = por %p126, %p127
      %p129 = scmp.ne.s32.totalorder %s120, %s121
      %p130 = scmp.eq.s32.totalorder %s26, 0
      %p131 = por %p129, %p130
      %p132 = scmp.ne.s32.totalorder %s120, %s121
      %p133 = scmp.eq.s32.totalorder %s27, 1
      %p134 = por %p132, %p133
      %p136 = scmp.ne.s32.totalorder %s121, %s135
      %p137 = scmp.eq.s32.totalorder %s27, 0
      %p138 = por %p136, %p137
      %s140 = sadd.s32 %s139, 1
      %p143 = scmp.eq.s32.totalorder %s21, 1
      %p144 = scmp.ne.s32.totalorder %s139, %s141
      %p145 = scmp.eq.s32.totalorder %s21, 0
      %p146 = por %p144, %p145
      %p147 = scmp.ne.s32.totalorder %s139, %s141
      %p148 = scmp.eq.s32.totalorder %s26, 1
      %p149 = por %p147, %p148
      %p150 = scmp.ne.s32.totalorder %s141, %s142
      %p151 = scmp.eq.s32.totalorder %s26, 0
      %p152 = por %p150, %p151
      %p153 = scmp.ne.s32.totalorder %s141, %s142
      %p154 = scmp.eq.s32.totalorder %s27, 1
      %p155 = por %p153, %p154
      %p157 = scmp.ne.s32.totalorder %s142, %s156
      %p158 = scmp.eq.s32.totalorder %s27, 0
      %p159 = por %p157, %p158
      %s161 = sadd.s32 %s160, 1
      %p164 = scmp.eq.s32.totalorder %s21, 1
      %p165 = scmp.ne.s32.totalorder %s160, %s162
      %p166 = scmp.eq.s32.totalorder %s21, 0
      %p167 = por %p165, %p166
      %p168 = scmp.ne.s32.totalorder %s160, %s162
      %p169 = scmp.eq.s32.totalorder %s26, 1
      %p170 = por %p168, %p169
      %p171 = scmp.ne.s32.totalorder %s162, %s163
      %p172 = scmp.eq.s32.totalorder %s26, 0
      %p173 = por %p171, %p172
      %p174 = scmp.ne.s32.totalorder %s162, %s163
      %p175 = scmp.eq.s32.totalorder %s27, 1
      %p176 = por %p174, %p175
      %p178 = scmp.ne.s32.totalorder %s163, %s177
      %p179 = scmp.eq.s32.totalorder %s27, 0
      %p180 = por %p178, %p179
      %s181 = ssub.s32 %s21, %s28
      %p182 = scmp.eq.s32.totalorder %s181, 0
      %s184 = sadd.s32 %s183, 1
      %s185 = scalar_select %p182, %s183, %s184
      %p188 = pneg %p182
      %p189 = scmp.eq.s32.totalorder %s21, 1
      %p190 = por %p188, %p189
      %p191 = scmp.ne.s32.totalorder %s183, %s186
      %p192 = scmp.eq.s32.totalorder %s21, 0
      %p193 = por %p191, %p192
      %p194 = scmp.ne.s32.totalorder %s183, %s186
      %p195 = scmp.eq.s32.totalorder %s26, 1
      %p196 = por %p194, %p195
      %p197 = scmp.ne.s32.totalorder %s186, %s187
      %p198 = scmp.eq.s32.totalorder %s26, 0
      %p199 = por %p197, %p198
      %p200 = scmp.ne.s32.totalorder %s186, %s187
      %p201 = scmp.eq.s32.totalorder %s27, 1
      %p202 = por %p200, %p201
      %p204 = scmp.ne.s32.totalorder %s187, %s203
      %p205 = scmp.eq.s32.totalorder %s27, 0
      %p206 = por %p204, %p205
      %p207 = scmp.le.s32.totalorder 1, %s21
      %p208 = scmp.lt.s32.totalorder %s21, 3
      %p209 = pnand %p207, %p208
      %p210 = pneg %p209
      // Predicated region
      $region9: #{tpu_custom_call.1} parent=5 // pred_check
        _
      $region10: #{tpu_custom_call.1} parent=5 // pred_check_branch
        %212 = sbr.rel (%p209) target = $region12
      $region11: #{tpu_custom_call.1} parent=5 // pred_region
        %s213 = ssub.s32 %s21, 1
        // Predicated region
        $region13: #{tpu_custom_call.1} parent=11 // pred_check
          %p214 = pneg %p68
        $region14: #{tpu_custom_call.1} parent=11 // pred_check_branch
          %216 = sbr.rel (%p214) target = $region16
        $region15: #{tpu_custom_call.1} parent=11 // pred_region
          %s218 = ssub.s32 256, 256
          %219 = vsyncadd [#allocation6], %s218
          %s220 = sshll.u32 [#allocation5], 4
          %s221 = int_to_ptr.vmem [resolvable:$true] %s220
          %226 = dma.hbm_to_vmem [thread:$0]  %s1, 256, %s221, [#allocation6], 64, 64, 4
        $region16: #{tpu_custom_call.1} parent=11 // pred_fallthru
          _
        // Predicated region
        $region17: #{tpu_custom_call.1} parent=11 // pred_check
          %p227 = pneg %p89
        $region18: #{tpu_custom_call.1} parent=11 // pred_check_branch
          %229 = sbr.rel (%p227) target = $region20
        $region19: #{tpu_custom_call.1} parent=11 // pred_region
          _
        $region20: #{tpu_custom_call.1} parent=11 // pred_fallthru
          _
        // Predicated region
        $region21: #{tpu_custom_call.1} parent=11 // pred_check
          %p230 = pneg %p110
        $region22: #{tpu_custom_call.1} parent=11 // pred_check_branch
          %232 = sbr.rel (%p230) target = $region24
        $region23: #{tpu_custom_call.1} parent=11 // pred_region
          %s234 = ssub.s32 1024, 1024
          %235 = vsyncadd [#allocation6], %s234
          %s236 = sshll.u32 [#allocation7], 4
          %s237 = int_to_ptr.vmem [resolvable:$true] %s236
          %242 = dma.hbm_to_vmem [thread:$0]  %s3, 1024, %s237, [#allocation6], 64, 64, 4
        $region24: #{tpu_custom_call.1} parent=11 // pred_fallthru
          _
        // Predicated region
        $region25: #{tpu_custom_call.1} parent=11 // pred_check
          %p243 = pneg %p131
        $region26: #{tpu_custom_call.1} parent=11 // pred_check_branch
          %245 = sbr.rel (%p243) target = $region28
        $region27: #{tpu_custom_call.1} parent=11 // pred_region
          _
        $region28: #{tpu_custom_call.1} parent=11 // pred_fallthru
          _
        // Predicated region
        $region29: #{tpu_custom_call.1} parent=11 // pred_check
          %p246 = pneg %p152
        $region30: #{tpu_custom_call.1} parent=11 // pred_check_branch
          %248 = sbr.rel (%p246) target = $region32
        $region31: #{tpu_custom_call.1} parent=11 // pred_region
          %s250 = ssub.s32 1024, 1024
          %251 = vsyncadd [#allocation9], %s250
          %s252 = sshll.u32 [#allocation8], 4
          %s253 = int_to_ptr.vmem [resolvable:$true] %s252
          %258 = dma.hbm_to_vmem [thread:$0]  %s5, 1024, %s253, [#allocation9], 64, 64, 4
        $region32: #{tpu_custom_call.1} parent=11 // pred_fallthru
          _
        // Predicated region
        $region33: #{tpu_custom_call.1} parent=11 // pred_check
          %p259 = pneg %p173
        $region34: #{tpu_custom_call.1} parent=11 // pred_check_branch
          %261 = sbr.rel (%p259) target = $region36
        $region35: #{tpu_custom_call.1} parent=11 // pred_region
          _
        $region36: #{tpu_custom_call.1} parent=11 // pred_fallthru
          _
      $region12: #{tpu_custom_call.1} parent=5 // pred_fallthru
        _
      %p262 = scmp.lt.s32.totalorder %s21, 2
      // Predicated region
      $region37: #{tpu_custom_call.1} parent=5 // pred_check
        %p263 = pneg %p262
      $region38: #{tpu_custom_call.1} parent=5 // pred_check_branch
        %265 = sbr.rel (%p263) target = $region40
      $region39: #{tpu_custom_call.1} parent=5 // pred_region
        // Predicated region
        $region41: #{tpu_custom_call.1} parent=39 // pred_check
          %p266 = pneg %p41
        $region42: #{tpu_custom_call.1} parent=39 // pred_check_branch
          %268 = sbr.rel (%p266) target = $region44
        $region43: #{tpu_custom_call.1} parent=39 // pred_region
          %s269 = sand.u32 %s31, 1
          %s270 = scalar_lea.sflag [#allocation3], %s269
          %s271 = sand.u32 %s31, 1
          %s272 = smul.addr %s271, 8
          %s273 = scalar_lea.vmem [#allocation2], %s272
          %s274 = smul.u32 2, %s21
          %s275 = ssub.s32 3, %s274
          %p276 = scmp.lt.s32.totalorder %s275, 2
          %s277 = scalar_select %p276, %s275, 2
          %s278 = smul.u32 64, %s277
          %s280 = ssub.s32 128, %s278
          %281 = vsyncadd %s270, %s280
          %p282 = scmp.ne.s32.totalorder 0, %s278
          %s283 = smul.addr %s274, 64
          %s284 = scalar_lea.hbm %s0, %s283
          %s285 = smul.u32 4, %s277
          %s286 = sshll.u32 %s273, 4
          %s287 = int_to_ptr.vmem [resolvable:$true] %s286
          %s288 = sshll.u32 %s285, 4
          %292 = dma.hbm_to_vmem [thread:$0]  (%p282), %s284, %s288, %s287, %s270, 64, 64, 4
        $region44: #{tpu_custom_call.1} parent=39 // pred_fallthru
          _
      $region40: #{tpu_custom_call.1} parent=5 // pred_fallthru
        _
      %p293 = scmp.le.s32.totalorder 1, %s21
      %p294 = scmp.lt.s32.totalorder %s21, 3
      %p295 = pnand %p293, %p294
      %p296 = pneg %p295
      // Predicated region
      $region45: #{tpu_custom_call.1} parent=5 // pred_check
        _
      $region46: #{tpu_custom_call.1} parent=5 // pred_check_branch
        %298 = sbr.rel (%p295) target = $region48
      $region47: #{tpu_custom_call.1} parent=5 // pred_region
        %s299 = ssub.s32 %s21, 1
        %s300 = sand.u32 %s34, 1
        %s301 = scalar_lea.sflag [#allocation3], %s300
        %s302 = sand.u32 %s34, 1
        %s303 = smul.addr %s302, 8
        %s304 = scalar_lea.vmem [#allocation2], %s303
        // Predicated region
        $region49: #{tpu_custom_call.1} parent=47 // pred_check
          %p305 = pneg %p47
        $region50: #{tpu_custom_call.1} parent=47 // pred_check_branch
          %307 = sbr.rel (%p305) target = $region52
        $region51: #{tpu_custom_call.1} parent=47 // pred_region
          %308 = dma.done %s301, 128
        $region52: #{tpu_custom_call.1} parent=47 // pred_fallthru
          _
        // Predicated region
        $region53: #{tpu_custom_call.1} parent=47 // pred_check
          %p309 = pneg %p68
        $region54: #{tpu_custom_call.1} parent=47 // pred_check_branch
          %311 = sbr.rel (%p309) target = $region56
        $region55: #{tpu_custom_call.1} parent=47 // pred_region
          %312 = dma.done [#allocation6], 256
        $region56: #{tpu_custom_call.1} parent=47 // pred_fallthru
          _
        // Predicated region
        $region57: #{tpu_custom_call.1} parent=47 // pred_check
          %p313 = pneg %p110
        $region58: #{tpu_custom_call.1} parent=47 // pred_check_branch
          %315 = sbr.rel (%p313) target = $region60
        $region59: #{tpu_custom_call.1} parent=47 // pred_region
          %316 = dma.done [#allocation6], 1024
        $region60: #{tpu_custom_call.1} parent=47 // pred_fallthru
          _
        // Predicated region
        $region61: #{tpu_custom_call.1} parent=47 // pred_check
          %p317 = pneg %p152
        $region62: #{tpu_custom_call.1} parent=47 // pred_check_branch
          %319 = sbr.rel (%p317) target = $region64
        $region63: #{tpu_custom_call.1} parent=47 // pred_region
          %320 = dma.done [#allocation9], 1024
        $region64: #{tpu_custom_call.1} parent=47 // pred_fallthru
          _
        %s321 = sand.u32 %s34, 1
        %s322 = scalar_lea.sflag [#allocation3], %s321
        %s323 = sand.u32 %s34, 1
        %s324 = smul.addr %s323, 8
        %s325 = scalar_lea.vmem [#allocation2], %s324
        %p326 = pneg %p47
        %p327 = pneg %p44
        %p328 = pneg %p68
        %p329 = pneg %p65
        %p330 = pneg %p89
        %p331 = pneg %p86
        %p332 = pneg %p110
        %p333 = pneg %p107
        %p334 = pneg %p131
        %p335 = pneg %p128
        %p336 = pneg %p152
        %p337 = pneg %p149
        %p338 = pneg %p173
        %p339 = pneg %p170
        %p340 = pneg %p199
        %p341 = pneg %p196
        %s342 = sand.u32 %s186, 1
        %s343 = scalar_lea.sflag [#allocation4], %s342
        %s344 = sand.u32 %s186, 1
        %s345 = smul.addr %s344, 16
        %s346 = scalar_lea.vmem [#allocation10], %s345
        %s347 = smul.u32 2, %s26
        %s348 = ssub.s32 3, %s347
        %p349 = scmp.lt.s32.totalorder %s348, 2
        %s350 = scalar_select %p349, %s348, 2
        %s351 = smul.u32 64, %s350
        %s352 = smul.u32 2, %s26
        %s353 = ssub.s32 3, %s352
        %p354 = scmp.lt.s32.totalorder %s353, 2
        %s355 = scalar_select %p354, %s353, 2
        %s356 = smul.u32 128, %s355
        %v358 = vld [vmem:[%s304] sm:$0xf]
        %v359 = vld [vmem:[%s304 + $0x4] sm:$0xf]
        %v360 = vld [vmem:[#allocation5] sm:$0xf]
        %v361 = vld [vmem:[#allocation5 + $0x4] sm:$0xf]
        %v362 = vld [vmem:[#allocation5 + $0x8] sm:$0xf]
        %v363 = vld [vmem:[#allocation5 + $0xc] sm:$0xf]
        %v364 = vld [vmem:[%s2] sm:$0x1]
        %v366 = vlaneseq
        %v367 = vshrl.u32 %v366, 7
        %v368 = vsub.s32 0, %v367
        %v369 = vrot.slane %v364, %v368
        %v373 = vunpack.c.l.b16 %v358
        %v374 = vunpack.c.l.b16 %v359
        %v375 = vpack.c.b16 %v374, %v373
        %v380 = vunpack.c.l.b16 %v360
        %v381 = vunpack.c.l.b16 %v361
        %v382 = vunpack.c.l.b16 %v362
        %v383 = vunpack.c.l.b16 %v363
        %v384 = vpack.c.b16 %v381, %v380
        %v385 = vpack.c.b16 %v383, %v382
        %vm388 = vcmask 261120
        %v390 = vsel %vm388, %v375, 0
        %392 = vmatprep.subr.bf16.mxu0 0
        %393 = vmatpush1.bf16.msra.mxu0 0
        %394 = vmatprep.subr.bf16.mxu0 0
        %395 = vmatpush1.bf16.msra.mxu0 0
        %396 = vmatprep.subr.bf16.mxu0 0
        %397 = vmatpush1.bf16.msra.mxu0 0
        %398 = vmatprep.subr.bf16.mxu0 0
        %399 = vmatpush1.bf16.msra.mxu0 0
        %400 = vmatprep.subr.bf16.mxu0 0
        %401 = vmatpush1.bf16.msra.mxu0 0
        %402 = vmatprep.subr.bf16.mxu0 0
        %403 = vmatpush1.bf16.msra.mxu0 0
        %404 = vmatprep.subr.bf16.mxu0 0
        %405 = vmatpush1.bf16.msra.mxu0 %v385
        %406 = vmatprep.subr.bf16.mxu0 0
        %407 = vmatpush1.bf16.msra.mxu0 %v384
        %408 = vmatprep.subr.bf16.mxu0 0
        %409 = vmatpush2.bf16.msra.mxu0 0
        %410 = vmatprep.subr.bf16.mxu0 0
        %411 = vmatpush2.bf16.msra.mxu0 0
        %412 = vmatprep.subr.bf16.mxu0 0
        %413 = vmatpush2.bf16.msra.mxu0 0
        %414 = vmatprep.subr.bf16.mxu0 0
        %415 = vmatpush2.bf16.msra.mxu0 0
        %416 = vmatprep.subr.bf16.mxu0 0
        %417 = vmatpush2.bf16.msra.mxu0 0
        %418 = vmatprep.subr.bf16.mxu0 0
        %419 = vmatpush2.bf16.msra.mxu0 0
        %420 = vmatprep.subr.bf16.mxu0 0
        %421 = vmatpush2.bf16.msra.mxu0 0
        %422 = vmatprep.subr.bf16.mxu0 0
        %423 = vmatpush2.bf16.msra.mxu0 0
        %424 = vmatprep.mubr.bf16.mxu0 0
        %425 = vmatmul.mubr.bf16.gmra.mxu0 %v390
        %v426 = vpop.f32.mrf.mxu0
        %v427 = vadd.f32 %v369, %v426
        %v428 = vpop.f32.mrf.mxu0
        %v429 = vpop.f32.mrf.mxu0
        %v430 = vadd.f32 %v369, %v429
        %v431 = vpop.f32.mrf.mxu0
        %432 = vdwg.mxu0
        %v433 = vmax.f32 %v427, 0.0
        %v434 = vmax.f32 %v430, 0.0
        %v435 = vpack.c.bf16 %v434, %v433
        %v436 = vld [vmem:[#allocation7] sm:$0xf]
        %v437 = vld [vmem:[#allocation7 + $0x4] sm:$0xf]
        %v438 = vld [vmem:[#allocation7 + $0x8] sm:$0xf]
        %v439 = vld [vmem:[#allocation7 + $0xc] sm:$0xf]
        %v440 = vld [vmem:[#allocation7 + $0x10] sm:$0xf]
        %v441 = vld [vmem:[#allocation7 + $0x14] sm:$0xf]
        %v442 = vld [vmem:[#allocation7 + $0x18] sm:$0xf]
        %v443 = vld [vmem:[#allocation7 + $0x1c] sm:$0xf]
        %v444 = vld [vmem:[#allocation7 + $0x20] sm:$0xf]
        %v445 = vld [vmem:[#allocation7 + $0x24] sm:$0xf]
        %v446 = vld [vmem:[#allocation7 + $0x28] sm:$0xf]
        %v447 = vld [vmem:[#allocation7 + $0x2c] sm:$0xf]
        %v448 = vld [vmem:[#allocation7 + $0x30] sm:$0xf]
        %v449 = vld [vmem:[#allocation7 + $0x34] sm:$0xf]
        %v450 = vld [vmem:[#allocation7 + $0x38] sm:$0xf]
        %v451 = vld [vmem:[#allocation7 + $0x3c] sm:$0xf]
        %v452 = vld [vmem:[%s4] sm:$0x1]
        %v454 = vlaneseq
        %v455 = vshrl.u32 %v454, 7
        %v456 = vsub.s32 0, %v455
        %v457 = vrot.slane %v452, %v456
        %v475 = vunpack.c.l.b16 %v436
        %v476 = vunpack.c.l.b16 %v437
        %v477 = vunpack.c.l.b16 %v438
        %v478 = vunpack.c.l.b16 %v439
        %v479 = vunpack.c.l.b16 %v440
        %v480 = vunpack.c.l.b16 %v441
        %v481 = vunpack.c.l.b16 %v442
        %v482 = vunpack.c.l.b16 %v443
        %v483 = vunpack.c.l.b16 %v444
        %v484 = vunpack.c.l.b16 %v445
        %v485 = vunpack.c.l.b16 %v446
        %v486 = vunpack.c.l.b16 %v447
        %v487 = vunpack.c.l.b16 %v448
        %v488 = vunpack.c.l.b16 %v449
        %v489 = vunpack.c.l.b16 %v450
        %v490 = vunpack.c.l.b16 %v451
        %v491 = vpack.c.b16 %v476, %v475
        %v492 = vpack.c.b16 %v478, %v477
        %v493 = vpack.c.b16 %v480, %v479
        %v494 = vpack.c.b16 %v482, %v481
        %v495 = vpack.c.b16 %v484, %v483
        %v496 = vpack.c.b16 %v486, %v485
        %v497 = vpack.c.b16 %v488, %v487
        %v498 = vpack.c.b16 %v490, %v489
        %507 = vmatprep.subr.bf16.mxu0 0
        %508 = vmatpush1.bf16.msra.mxu0 %v498
        %509 = vmatprep.subr.bf16.mxu0 0
        %510 = vmatpush1.bf16.msra.mxu0 %v497
        %511 = vmatprep.subr.bf16.mxu0 0
        %512 = vmatpush1.bf16.msra.mxu0 %v496
        %513 = vmatprep.subr.bf16.mxu0 0
        %514 = vmatpush1.bf16.msra.mxu0 %v495
        %515 = vmatprep.subr.bf16.mxu0 0
        %516 = vmatpush1.bf16.msra.mxu0 %v494
        %517 = vmatprep.subr.bf16.mxu0 0
        %518 = vmatpush1.bf16.msra.mxu0 %v493
        %519 = vmatprep.subr.bf16.mxu0 0
        %520 = vmatpush1.bf16.msra.mxu0 %v492
        %521 = vmatprep.subr.bf16.mxu0 0
        %522 = vmatpush1.bf16.msra.mxu0 %v491
        %523 = vmatprep.subr.bf16.mxu0 0
        %524 = vmatpush2.bf16.msra.mxu0 0
        %525 = vmatprep.subr.bf16.mxu0 0
        %526 = vmatpush2.bf16.msra.mxu0 0
        %527 = vmatprep.subr.bf16.mxu0 0
        %528 = vmatpush2.bf16.msra.mxu0 0
        %529 = vmatprep.subr.bf16.mxu0 0
        %530 = vmatpush2.bf16.msra.mxu0 0
        %531 = vmatprep.subr.bf16.mxu0 0
        %532 = vmatpush2.bf16.msra.mxu0 0
        %533 = vmatprep.subr.bf16.mxu0 0
        %534 = vmatpush2.bf16.msra.mxu0 0
        %535 = vmatprep.subr.bf16.mxu0 0
        %536 = vmatpush2.bf16.msra.mxu0 0
        %537 = vmatprep.subr.bf16.mxu0 0
        %538 = vmatpush2.bf16.msra.mxu0 0
        %539 = vmatprep.mubr.bf16.mxu0 0
        %540 = vmatmul.mubr.bf16.gmra.mxu0 %v435
        %v541 = vpop.f32.mrf.mxu0
        %v542 = vadd.f32 %v457, %v541
        %v543 = vpop.f32.mrf.mxu0
        %v544 = vpop.f32.mrf.mxu0
        %v545 = vadd.f32 %v457, %v544
        %v546 = vpop.f32.mrf.mxu0
        %547 = vdwg.mxu0
        %v548 = vmax.f32 %v542, 0.0
        %v549 = vmax.f32 %v545, 0.0
        %v550 = vpack.c.bf16 %v549, %v548
        %v551 = vld [vmem:[#allocation8] sm:$0xf]
        %v552 = vld [vmem:[#allocation8 + $0x4] sm:$0xf]
        %v553 = vld [vmem:[#allocation8 + $0x8] sm:$0xf]
        %v554 = vld [vmem:[#allocation8 + $0xc] sm:$0xf]
        %v555 = vld [vmem:[#allocation8 + $0x10] sm:$0xf]
        %v556 = vld [vmem:[#allocation8 + $0x14] sm:$0xf]
        %v557 = vld [vmem:[#allocation8 + $0x18] sm:$0xf]
        %v558 = vld [vmem:[#allocation8 + $0x1c] sm:$0xf]
        %v559 = vld [vmem:[#allocation8 + $0x20] sm:$0xf]
        %v560 = vld [vmem:[#allocation8 + $0x24] sm:$0xf]
        %v561 = vld [vmem:[#allocation8 + $0x28] sm:$0xf]
        %v562 = vld [vmem:[#allocation8 + $0x2c] sm:$0xf]
        %v563 = vld [vmem:[#allocation8 + $0x30] sm:$0xf]
        %v564 = vld [vmem:[#allocation8 + $0x34] sm:$0xf]
        %v565 = vld [vmem:[#allocation8 + $0x38] sm:$0xf]
        %v566 = vld [vmem:[#allocation8 + $0x3c] sm:$0xf]
        %v567 = vld [vmem:[%s6] sm:$0x1]
        %v569 = vlaneseq
        %v570 = vshrl.u32 %v569, 7
        %v571 = vsub.s32 0, %v570
        %v572 = vrot.slane %v567, %v571
        %v590 = vunpack.c.l.b16 %v551
        %v591 = vunpack.c.l.b16 %v552
        %v592 = vunpack.c.l.b16 %v553
        %v593 = vunpack.c.l.b16 %v554
        %v594 = vunpack.c.l.b16 %v555
        %v595 = vunpack.c.l.b16 %v556
        %v596 = vunpack.c.l.b16 %v557
        %v597 = vunpack.c.l.b16 %v558
        %v598 = vunpack.c.l.b16 %v559
        %v599 = vunpack.c.l.b16 %v560
        %v600 = vunpack.c.l.b16 %v561
        %v601 = vunpack.c.l.b16 %v562
        %v602 = vunpack.c.l.b16 %v563
        %v603 = vunpack.c.l.b16 %v564
        %v604 = vunpack.c.l.b16 %v565
        %v605 = vunpack.c.l.b16 %v566
        %v606 = vpack.c.b16 %v591, %v590
        %v607 = vpack.c.b16 %v593, %v592
        %v608 = vpack.c.b16 %v595, %v594
        %v609 = vpack.c.b16 %v597, %v596
        %v610 = vpack.c.b16 %v599, %v598
        %v611 = vpack.c.b16 %v601, %v600
        %v612 = vpack.c.b16 %v603, %v602
        %v613 = vpack.c.b16 %v605, %v604
        %622 = vmatprep.subr.bf16.mxu0 0
        %623 = vmatpush1.bf16.msra.mxu0 %v613
        %624 = vmatprep.subr.bf16.mxu0 0
        %625 = vmatpush1.bf16.msra.mxu0 %v612
        %626 = vmatprep.subr.bf16.mxu0 0
        %627 = vmatpush1.bf16.msra.mxu0 %v611
        %628 = vmatprep.subr.bf16.mxu0 0
        %629 = vmatpush1.bf16.msra.mxu0 %v610
        %630 = vmatprep.subr.bf16.mxu0 0
        %631 = vmatpush1.bf16.msra.mxu0 %v609
        %632 = vmatprep.subr.bf16.mxu0 0
        %633 = vmatpush1.bf16.msra.mxu0 %v608
        %634 = vmatprep.subr.bf16.mxu0 0
        %635 = vmatpush1.bf16.msra.mxu0 %v607
        %636 = vmatprep.subr.bf16.mxu0 0
        %637 = vmatpush1.bf16.msra.mxu0 %v606
        %638 = vmatprep.subr.bf16.mxu0 0
        %639 = vmatpush2.bf16.msra.mxu0 0
        %640 = vmatprep.subr.bf16.mxu0 0
        %641 = vmatpush2.bf16.msra.mxu0 0
        %642 = vmatprep.subr.bf16.mxu0 0
        %643 = vmatpush2.bf16.msra.mxu0 0
        %644 = vmatprep.subr.bf16.mxu0 0
        %645 = vmatpush2.bf16.msra.mxu0 0
        %646 = vmatprep.subr.bf16.mxu0 0
        %647 = vmatpush2.bf16.msra.mxu0 0
        %648 = vmatprep.subr.bf16.mxu0 0
        %649 = vmatpush2.bf16.msra.mxu0 0
        %650 = vmatprep.subr.bf16.mxu0 0
        %651 = vmatpush2.bf16.msra.mxu0 0
        %652 = vmatprep.subr.bf16.mxu0 0
        %653 = vmatpush2.bf16.msra.mxu0 0
        %654 = vmatprep.mubr.bf16.mxu0 0
        %655 = vmatmul.mubr.bf16.gmra.mxu0 %v550
        %v656 = vpop.f32.mrf.mxu0
        %v657 = vadd.f32 %v572, %v656
        %v658 = vpop.f32.mrf.mxu0
        %v659 = vpop.f32.mrf.mxu0
        %v660 = vadd.f32 %v572, %v659
        %v661 = vpop.f32.mrf.mxu0
        %662 = vdwg.mxu0
        %663 = vst [vmem:[%s346] sm:$0xff] %v657
        %664 = vst [vmem:[%s346 + $0x8] sm:$0xff] %v660
        %s665 = sand.u32 %s186, 1
        %s666 = scalar_lea.sflag [#allocation4], %s665
        %s667 = sand.u32 %s186, 1
        %s668 = smul.addr %s667, 16
        %s669 = scalar_lea.vmem [#allocation10], %s668
        // Predicated region
        $region65: #{tpu_custom_call.1} parent=47 // pred_check
          %p670 = pneg %p196
        $region66: #{tpu_custom_call.1} parent=47 // pred_check_branch
          %672 = sbr.rel (%p670) target = $region68
        $region67: #{tpu_custom_call.1} parent=47 // pred_region
          %s673 = smul.u32 2, %s26
          %s674 = ssub.s32 3, %s673
          %p675 = scmp.lt.s32.totalorder %s674, 2
          %s676 = scalar_select %p675, %s674, 2
          %s677 = smul.u32 128, %s676
          %s679 = ssub.s32 256, %s677
          %680 = vsyncadd %s666, %s679
          %p681 = scmp.ne.s32.totalorder 0, %s677
          %s682 = smul.addr %s673, 128
          %s683 = scalar_lea.hbm %s7, %s682
          %s684 = smul.u32 8, %s676
          %s685 = sshll.u32 %s669, 4
          %s686 = int_to_ptr.vmem [resolvable:$true] %s685
          %s687 = sshll.u32 %s684, 4
          %691 = dma.vmem_to_hbm [thread:$0]  (%p681), %s686, %s687, %s683, %s666, 128, 128, 8
        $region68: #{tpu_custom_call.1} parent=47 // pred_fallthru
          _
      $region48: #{tpu_custom_call.1} parent=5 // pred_fallthru
        _
      %p692 = scmp.le.s32.totalorder 2, %s21
      // Predicated region
      $region69: #{tpu_custom_call.1} parent=5 // pred_check
        %p693 = pneg %p692
      $region70: #{tpu_custom_call.1} parent=5 // pred_check_branch
        %695 = sbr.rel (%p693) target = $region72
      $region71: #{tpu_custom_call.1} parent=5 // pred_region
        %s696 = ssub.s32 %s21, 2
        // Predicated region
        $region73: #{tpu_custom_call.1} parent=71 // pred_check
          %p697 = pneg %p202
        $region74: #{tpu_custom_call.1} parent=71 // pred_check_branch
          %699 = sbr.rel (%p697) target = $region76
        $region75: #{tpu_custom_call.1} parent=71 // pred_region
          %s700 = sand.u32 %s187, 1
          %s701 = scalar_lea.sflag [#allocation4], %s700
          %s702 = sand.u32 %s187, 1
          %s703 = smul.addr %s702, 16
          %s704 = scalar_lea.vmem [#allocation10], %s703
          %705 = dma.done %s701, 256
        $region76: #{tpu_custom_call.1} parent=71 // pred_fallthru
          _
      $region72: #{tpu_custom_call.1} parent=5 // pred_fallthru
        _
    $region6: #{tpu_custom_call.1} parent=1 // loop_footer
      %s25 = sadd.s32 1, %s21
    $region7: #{tpu_custom_call.1} parent=1 // loop_footer_branch
      %20 = sbr.rel target = $region3
    $region8: #{tpu_custom_call.1} parent=1 // loop_exit
      _
    %706 = vsyncpa [#allocation3], 1
    %s707 = scalar_lea.sflag [#allocation3], 1
    %708 = vsyncpa %s707, 1
    %709 = vsyncpa [#allocation6], 1
    %710 = vsyncpa [#allocation9], 1
    %711 = vsyncpa [#allocation4], 1
    %s712 = scalar_lea.sflag [#allocation4], 1
    %713 = vsyncpa %s712, 1

// kernel: tpu_custom_call.1
$region0: #{tpu_custom_call.1}
  #allocation0 [shape = 'u32[]', space=smem, size = 0x4, offset = 0x4, fixed_abs, tag = 'smem constant byte address 0x4 - core index']
  #allocation1 [shape = 'u32[144,128]{1,0:T(1,128)}', space=vmem, size = 0x12000, scoped, tag = 'internal scratch']
  #allocation2 [shape = 'f32[16,128]{1,0:T(8,128)}', space=vmem, size = 0x2000, scoped, tag = 'scratch operand']
  %s0 = inlined_call_operand.hbm [shape: bf16[20,32], index: 0, kind: input, shape index: {}]
  %s1 = inlined_call_operand.hbm [shape: bf16[32,128], index: 1, kind: input, shape index: {}]
  %s2 = inlined_call_operand.vmem [shape: f32[1,128], index: 2, kind: input, shape index: {}]
  %s3 = inlined_call_operand.hbm [shape: bf16[20,128], index: 3, kind: output, shape index: {}]
  %s4 = sld [smem:[#allocation0]]
  $region61: #{tpu_custom_call.1} parent=0
    _
  %s6 = ssub.s32 1, %s4
  %s7 = scalar_select 0, %s6, %s4
  $region1: #{tpu_custom_call.1} parent=0
    #allocation3 [shape = 'u8[8192]{0}', space=vmem, size = 0x2000, scoped, tag = 'input window, operand 0']
    #allocation4 [shape = 's32[2]{0}', space=sflag, size = 0x8, scoped, tag = 'scoped memory for tpu_custom_call.1']
    #allocation5 [shape = 's32[2]{0}', space=sflag, size = 0x8, scoped, tag = 'scoped memory for tpu_custom_call.1']
    #allocation6 [shape = 'u8[8192]{0}', space=vmem, size = 0x2000, scoped, tag = 'input window, operand 1, single buffered']
    #allocation7 [shape = 's32[1]{0}', space=sflag, size = 0x4, scoped, tag = 'scoped memory for tpu_custom_call.1']
    #allocation8 [shape = 'u8[8192]{0}', space=vmem, size = 0x2000, scoped, tag = 'output window, operand 0']
    %8 = vsyncpa [#allocation4], 0
    %s9 = scalar_lea.sflag [#allocation4], 1
    %10 = vsyncpa %s9, 0
    %11 = vsyncpa [#allocation7], 0
    %12 = vsyncpa [#allocation5], 0
    %s13 = scalar_lea.sflag [#allocation5], 1
    %14 = vsyncpa %s13, 0
    loop: start=0, step=1, limit=4
    $region2: #{tpu_custom_call.1} parent=1 // loop_pre_header
      _
    $region3: #{tpu_custom_call.1} parent=1 // loop_header
      %s16 = sphi 0, %s20
      %p17 = scmp.ge.s32.totalorder %s16, 4
      %s23 = sphi 0, %s42
      %s24 = sphi 0, %s38
      %s25 = sphi 0, %s34
      %s26 = sphi 0, %s23
      %s27 = sphi 0, %s24
      %s28 = sphi 0, %s25
      %s29 = sphi 0, %s26
      %s30 = sphi 0, %s27
      %s31 = sphi 0, %s28
      %s47 = sphi 0, %s49
      %s50 = sphi 0, %s47
      %s51 = sphi 0, %s50
      %s67 = sphi 0, %s51
      %s75 = sphi 0, %s77
      %s78 = sphi 0, %s75
      %s79 = sphi 0, %s78
      %s95 = sphi 0, %s79
      %s101 = sphi 0, %s103
      %s104 = sphi 0, %s101
      %s105 = sphi 0, %s104
      %s121 = sphi 0, %s105
      %s129 = sphi 0, %s131
      %s132 = sphi 0, %s129
      %s133 = sphi 0, %s132
      %s149 = sphi 0, %s133
    $region4: #{tpu_custom_call.1} parent=1 // loop_header_branch
      %19 = sbr.rel (%p17) target = $region8
    $region5: #{tpu_custom_call.1} parent=1 // loop_body
      %s21 = ssub.s32 %s16, 1
      %s22 = ssub.s32 %s16, 2
      %s32 = sadd.s32 1, %s25
      %p33 = scmp.ge.s32.totalorder %s32, 1
      %s34 = scalar_select %p33, 0, %s32
      %s35 = sadd.s32 1, %s24
      %s36 = scalar_select %p33, %s35, %s24
      %p37 = scmp.ge.s32.totalorder %s36, 1
      %s38 = scalar_select %p37, 0, %s36
      %s39 = sadd.s32 1, %s23
      %s40 = scalar_select %p37, %s39, %s23
      %p41 = scmp.ge.s32.totalorder %s40, 2
      %s42 = scalar_select %p41, 0, %s40
      %s43 = ssub.s32 %s23, %s42
      %s44 = ssub.s32 %s25, %s34
      %s45 = sor.u32 %s43, %s44
      %p46 = scmp.eq.s32.totalorder %s45, 0
      %s48 = sadd.s32 %s47, 1
      %s49 = scalar_select %p46, %s47, %s48
      %p52 = pneg %p46
      %p53 = scmp.eq.s32.totalorder %s16, 1
      %p54 = por %p52, %p53
      %p55 = scmp.ne.s32.totalorder %s47, %s50
      %p56 = scmp.eq.s32.totalorder %s16, 0
      %p57 = por %p55, %p56
      %p58 = scmp.ne.s32.totalorder %s47, %s50
      %p59 = scmp.eq.s32.totalorder %s21, 1
      %p60 = por %p58, %p59
      %p61 = scmp.ne.s32.totalorder %s50, %s51
      %p62 = scmp.eq.s32.totalorder %s21, 0
      %p63 = por %p61, %p62
      %p64 = scmp.ne.s32.totalorder %s50, %s51
      %p65 = scmp.eq.s32.totalorder %s22, 1
      %p66 = por %p64, %p65
      %p68 = scmp.ne.s32.totalorder %s51, %s67
      %p69 = scmp.eq.s32.totalorder %s22, 0
      %p70 = por %p68, %p69
      %s71 = ssub.s32 %s25, %s34
      %s72 = ssub.s32 %s24, %s38
      %s73 = sor.u32 %s71, %s72
      %p74 = scmp.eq.s32.totalorder %s73, 0
      %s76 = sadd.s32 %s75, 1
      %s77 = scalar_select %p74, %s75, %s76
      %p80 = pneg %p74
      %p81 = scmp.eq.s32.totalorder %s16, 1
      %p82 = por %p80, %p81
      %p83 = scmp.ne.s32.totalorder %s75, %s78
      %p84 = scmp.eq.s32.totalorder %s16, 0
      %p85 = por %p83, %p84
      %p86 = scmp.ne.s32.totalorder %s75, %s78
      %p87 = scmp.eq.s32.totalorder %s21, 1
      %p88 = por %p86, %p87
      %p89 = scmp.ne.s32.totalorder %s78, %s79
      %p90 = scmp.eq.s32.totalorder %s21, 0
      %p91 = por %p89, %p90
      %p92 = scmp.ne.s32.totalorder %s78, %s79
      %p93 = scmp.eq.s32.totalorder %s22, 1
      %p94 = por %p92, %p93
      %p96 = scmp.ne.s32.totalorder %s79, %s95
      %p97 = scmp.eq.s32.totalorder %s22, 0
      %p98 = por %p96, %p97
      %s99 = ssub.s32 %s24, %s38
      %p100 = scmp.eq.s32.totalorder %s99, 0
      %s102 = sadd.s32 %s101, 1
      %s103 = scalar_select %p100, %s101, %s102
      %p106 = pneg %p100
      %p107 = scmp.eq.s32.totalorder %s16, 1
      %p108 = por %p106, %p107
      %p109 = scmp.ne.s32.totalorder %s101, %s104
      %p110 = scmp.eq.s32.totalorder %s16, 0
      %p111 = por %p109, %p110
      %p112 = scmp.ne.s32.totalorder %s101, %s104
      %p113 = scmp.eq.s32.totalorder %s21, 1
      %p114 = por %p112, %p113
      %p115 = scmp.ne.s32.totalorder %s104, %s105
      %p116 = scmp.eq.s32.totalorder %s21, 0
      %p117 = por %p115, %p116
      %p118 = scmp.ne.s32.totalorder %s104, %s105
      %p119 = scmp.eq.s32.totalorder %s22, 1
      %p120 = por %p118, %p119
      %p122 = scmp.ne.s32.totalorder %s105, %s121
      %p123 = scmp.eq.s32.totalorder %s22, 0
      %p124 = por %p122, %p123
      %s125 = ssub.s32 %s23, %s42
      %s126 = ssub.s32 %s24, %s38
      %s127 = sor.u32 %s125, %s126
      %p128 = scmp.eq.s32.totalorder %s127, 0
      %s130 = sadd.s32 %s129, 1
      %s131 = scalar_select %p128, %s129, %s130
      %p134 = pneg %p128
      %p135 = scmp.eq.s32.totalorder %s16, 1
      %p136 = por %p134, %p135
      %p137 = scmp.ne.s32.totalorder %s129, %s132
      %p138 = scmp.eq.s32.totalorder %s16, 0
      %p139 = por %p137, %p138
      %p140 = scmp.ne.s32.totalorder %s129, %s132
      %p141 = scmp.eq.s32.totalorder %s21, 1
      %p142 = por %p140, %p141
      %p143 = scmp.ne.s32.totalorder %s132, %s133
      %p144 = scmp.eq.s32.totalorder %s21, 0
      %p145 = por %p143, %p144
      %p146 = scmp.ne.s32.totalorder %s132, %s133
      %p147 = scmp.eq.s32.totalorder %s22, 1
      %p148 = por %p146, %p147
      %p150 = scmp.ne.s32.totalorder %s133, %s149
      %p151 = scmp.eq.s32.totalorder %s22, 0
      %p152 = por %p150, %p151
      %p153 = scmp.le.s32.totalorder 1, %s16
      %p154 = scmp.lt.s32.totalorder %s16, 3
      %p155 = pnand %p153, %p154
      %p156 = pneg %p155
      // Predicated region
      $region9: #{tpu_custom_call.1} parent=5 // pred_check
        _
      $region10: #{tpu_custom_call.1} parent=5 // pred_check_branch
        %158 = sbr.rel (%p155) target = $region12
      $region11: #{tpu_custom_call.1} parent=5 // pred_region
        %s159 = ssub.s32 %s16, 1
        // Predicated region
        $region13: #{tpu_custom_call.1} parent=11 // pred_check
          %p160 = pneg %p91
        $region14: #{tpu_custom_call.1} parent=11 // pred_check_branch
          %162 = sbr.rel (%p160) target = $region16
        $region15: #{tpu_custom_call.1} parent=11 // pred_region
          %s163 = smul.u32 4, %s28
          %s165 = ssub.s32 256, 256
          %166 = vsyncadd [#allocation7], %s165
          %s167 = sadd.s32 %s27, %s163
          %s168 = smul.addr %s167, 64
          %s169 = scalar_lea.hbm %s1, %s168
          %s170 = sshll.u32 [#allocation6], 4
          %s171 = int_to_ptr.vmem [resolvable:$true] %s170
          %176 = dma.hbm_to_vmem [thread:$0]  %s169, 256, %s171, [#allocation7], 64, 64, 4
        $region16: #{tpu_custom_call.1} parent=11 // pred_fallthru
          _
        // Predicated region
        $region17: #{tpu_custom_call.1} parent=11 // pred_check
          %p177 = pneg %p117
        $region18: #{tpu_custom_call.1} parent=11 // pred_check_branch
          %179 = sbr.rel (%p177) target = $region20
        $region19: #{tpu_custom_call.1} parent=11 // pred_region
          %p180 = scmp.lt.s32.totalorder %s27, 0
          %s181 = scalar_select %p180, %s27, 0
          %s182 = scalar_lea.vmem %s2, %s181
        $region20: #{tpu_custom_call.1} parent=11 // pred_fallthru
          _
      $region12: #{tpu_custom_call.1} parent=5 // pred_fallthru
        _
      %p183 = scmp.lt.s32.totalorder %s16, 2
      // Predicated region
      $region21: #{tpu_custom_call.1} parent=5 // pred_check
        %p184 = pneg %p183
      $region22: #{tpu_custom_call.1} parent=5 // pred_check_branch
        %186 = sbr.rel (%p184) target = $region24
      $region23: #{tpu_custom_call.1} parent=5 // pred_region
        // Predicated region
        $region25: #{tpu_custom_call.1} parent=23 // pred_check
          %p187 = pneg %p57
        $region26: #{tpu_custom_call.1} parent=23 // pred_check_branch
          %189 = sbr.rel (%p187) target = $region28
        $region27: #{tpu_custom_call.1} parent=23 // pred_region
          %s190 = sand.u32 %s47, 1
          %s191 = scalar_lea.sflag [#allocation4], %s190
          %s192 = sand.u32 %s47, 1
          %s193 = smul.addr %s192, 8
          %s194 = scalar_lea.vmem [#allocation3], %s193
          %s195 = smul.u32 2, %s23
          %s196 = ssub.s32 3, %s195
          %p197 = scmp.lt.s32.totalorder %s196, 2
          %s198 = scalar_select %p197, %s196, 2
          %s199 = smul.u32 64, %s198
          %s201 = ssub.s32 128, %s199
          %202 = vsyncadd %s191, %s201
          %p203 = scmp.ne.s32.totalorder 0, %s199
          %s204 = sadd.s32 %s25, %s195
          %s205 = smul.addr %s204, 64
          %s206 = scalar_lea.hbm %s0, %s205
          %s207 = smul.u32 4, %s198
          %s208 = sshll.u32 %s194, 4
          %s209 = int_to_ptr.vmem [resolvable:$true] %s208
          %s210 = sshll.u32 %s207, 4
          %214 = dma.hbm_to_vmem [thread:$0]  (%p203), %s206, %s210, %s209, %s191, 64, 64, 4
        $region28: #{tpu_custom_call.1} parent=23 // pred_fallthru
          _
      $region24: #{tpu_custom_call.1} parent=5 // pred_fallthru
        _
      %p215 = scmp.le.s32.totalorder 1, %s16
      %p216 = scmp.lt.s32.totalorder %s16, 3
      %p217 = pnand %p215, %p216
      %p218 = pneg %p217
      // Predicated region
      $region29: #{tpu_custom_call.1} parent=5 // pred_check
        _
      $region30: #{tpu_custom_call.1} parent=5 // pred_check_branch
        %220 = sbr.rel (%p217) target = $region32
      $region31: #{tpu_custom_call.1} parent=5 // pred_region
        %s221 = ssub.s32 %s16, 1
        %s222 = sand.u32 %s50, 1
        %s223 = scalar_lea.sflag [#allocation4], %s222
        %s224 = sand.u32 %s50, 1
        %s225 = smul.addr %s224, 8
        %s226 = scalar_lea.vmem [#allocation3], %s225
        // Predicated region
        $region33: #{tpu_custom_call.1} parent=31 // pred_check
          %p227 = pneg %p63
        $region34: #{tpu_custom_call.1} parent=31 // pred_check_branch
          %229 = sbr.rel (%p227) target = $region36
        $region35: #{tpu_custom_call.1} parent=31 // pred_region
          %230 = dma.done %s223, 128
        $region36: #{tpu_custom_call.1} parent=31 // pred_fallthru
          _
        // Predicated region
        $region37: #{tpu_custom_call.1} parent=31 // pred_check
          %p231 = pneg %p91
        $region38: #{tpu_custom_call.1} parent=31 // pred_check_branch
          %233 = sbr.rel (%p231) target = $region40
        $region39: #{tpu_custom_call.1} parent=31 // pred_region
          %234 = dma.done [#allocation7], 256
        $region40: #{tpu_custom_call.1} parent=31 // pred_fallthru
          _
        %s235 = sand.u32 %s50, 1
        %s236 = scalar_lea.sflag [#allocation4], %s235
        %s237 = sand.u32 %s50, 1
        %s238 = smul.addr %s237, 8
        %s239 = scalar_lea.vmem [#allocation3], %s238
        %p240 = pneg %p63
        %p241 = pneg %p60
        %p242 = pneg %p91
        %p243 = pneg %p88
        %p244 = scmp.lt.s32.totalorder %s27, 0
        %s245 = scalar_select %p244, %s27, 0
        %s246 = scalar_lea.vmem %s2, %s245
        %p247 = pneg %p117
        %p248 = pneg %p114
        %p249 = pneg %p145
        %p250 = pneg %p142
        %s251 = sand.u32 %s132, 1
        %s252 = scalar_lea.sflag [#allocation5], %s251
        %s253 = sand.u32 %s132, 1
        %s254 = smul.addr %s253, 8
        %s255 = scalar_lea.vmem [#allocation8], %s254
        %s256 = smul.u32 2, %s26
        %s257 = ssub.s32 3, %s256
        %p258 = scmp.lt.s32.totalorder %s257, 2
        %s259 = scalar_select %p258, %s257, 2
        %s260 = smul.u32 64, %s259
        %s261 = smul.u32 4, %s28
        %p262 = scmp.lt.s32.totalorder %s27, 0
        %s263 = scalar_select %p262, %s27, 0
        %s264 = scalar_lea.vmem %s2, %s263
        %s265 = smul.u32 2, %s26
        %s266 = ssub.s32 3, %s265
        %p267 = scmp.lt.s32.totalorder %s266, 2
        %s268 = scalar_select %p267, %s266, 2
        %s269 = smul.u32 64, %s268
        %p271 = scmp.eq.s32.totalorder %s28, 0
        // Predicated region
        $region41: #{tpu_custom_call.1} parent=31 // pred_check
          %p272 = pneg %p271
        $region42: #{tpu_custom_call.1} parent=31 // pred_check_branch
          %274 = sbr.rel (%p272) target = $region44
        $region43: #{tpu_custom_call.1} parent=31 // pred_region
          %275 = vst [vmem:[#allocation2] sm:$0xff] 0.0
          %276 = vst [vmem:[#allocation2 + $0x8] sm:$0xff] 0.0
        $region44: #{tpu_custom_call.1} parent=31 // pred_fallthru
          _
        %v277 = vld [vmem:[#allocation2] sm:$0xff]
        %v278 = vld [vmem:[#allocation2 + $0x8] sm:$0xff]
        %v279 = vld [vmem:[%s226] sm:$0xf]
        %v280 = vld [vmem:[%s226 + $0x4] sm:$0xf]
        %v281 = vld [vmem:[#allocation6] sm:$0xf]
        %v282 = vld [vmem:[#allocation6 + $0x4] sm:$0xf]
        %v283 = vld [vmem:[#allocation6 + $0x8] sm:$0xf]
        %v284 = vld [vmem:[#allocation6 + $0xc] sm:$0xf]
        %v287 = vunpack.c.l.b16 %v279
        %v288 = vunpack.c.l.b16 %v280
        %v289 = vpack.c.b16 %v288, %v287
        %v294 = vunpack.c.l.b16 %v281
        %v295 = vunpack.c.l.b16 %v282
        %v296 = vunpack.c.l.b16 %v283
        %v297 = vunpack.c.l.b16 %v284
        %v298 = vpack.c.b16 %v295, %v294
        %v299 = vpack.c.b16 %v297, %v296
        %vm302 = vcmask 261120
        %v304 = vsel %vm302, %v289, 0
        %306 = vmatprep.subr.bf16.mxu0 0
        %307 = vmatpush1.bf16.msra.mxu0 0
        %308 = vmatprep.subr.bf16.mxu0 0
        %309 = vmatpush1.bf16.msra.mxu0 0
        %310 = vmatprep.subr.bf16.mxu0 0
        %311 = vmatpush1.bf16.msra.mxu0 0
        %312 = vmatprep.subr.bf16.mxu0 0
        %313 = vmatpush1.bf16.msra.mxu0 0
        %314 = vmatprep.subr.bf16.mxu0 0
        %315 = vmatpush1.bf16.msra.mxu0 0
        %316 = vmatprep.subr.bf16.mxu0 0
        %317 = vmatpush1.bf16.msra.mxu0 0
        %318 = vmatprep.subr.bf16.mxu0 0
        %319 = vmatpush1.bf16.msra.mxu0 %v299
        %320 = vmatprep.subr.bf16.mxu0 0
        %321 = vmatpush1.bf16.msra.mxu0 %v298
        %322 = vmatprep.subr.bf16.mxu0 0
        %323 = vmatpush2.bf16.msra.mxu0 0
        %324 = vmatprep.subr.bf16.mxu0 0
        %325 = vmatpush2.bf16.msra.mxu0 0
        %326 = vmatprep.subr.bf16.mxu0 0
        %327 = vmatpush2.bf16.msra.mxu0 0
        %328 = vmatprep.subr.bf16.mxu0 0
        %329 = vmatpush2.bf16.msra.mxu0 0
        %330 = vmatprep.subr.bf16.mxu0 0
        %331 = vmatpush2.bf16.msra.mxu0 0
        %332 = vmatprep.subr.bf16.mxu0 0
        %333 = vmatpush2.bf16.msra.mxu0 0
        %334 = vmatprep.subr.bf16.mxu0 0
        %335 = vmatpush2.bf16.msra.mxu0 0
        %336 = vmatprep.subr.bf16.mxu0 0
        %337 = vmatpush2.bf16.msra.mxu0 0
        %338 = vmatprep.mubr.bf16.mxu0 0
        %339 = vmatmul.mubr.bf16.gmra.mxu0 %v304
        %v340 = vpop.f32.mrf.mxu0
        %v341 = vadd.f32 0.0, %v340
        %v342 = vpop.f32.mrf.mxu0
        %v343 = vpop.f32.mrf.mxu0
        %v344 = vadd.f32 0.0, %v343
        %v345 = vpop.f32.mrf.mxu0
        %346 = vdwg.mxu0
        %v347 = vadd.f32 %v277, %v341
        %v348 = vadd.f32 %v278, %v344
        %349 = vst [vmem:[#allocation2] sm:$0xff] %v347
        %350 = vst [vmem:[#allocation2 + $0x8] sm:$0xff] %v348
        // Predicated region
        $region45: #{tpu_custom_call.1} parent=31 // pred_check
          %p351 = pneg %p271
        $region46: #{tpu_custom_call.1} parent=31 // pred_check_branch
          %353 = sbr.rel (%p351) target = $region48
        $region47: #{tpu_custom_call.1} parent=31 // pred_region
          %v354 = vld [vmem:[#allocation2] sm:$0xff]
          %v355 = vld [vmem:[#allocation2 + $0x8] sm:$0xff]
          %v356 = vld [vmem:[%s264] sm:$0x1]
          %v358 = vlaneseq
          %v359 = vshrl.u32 %v358, 7
          %v360 = vsub.s32 0, %v359
          %v361 = vrot.slane %v356, %v360
          %v363 = vadd.f32 %v354, %v361
          %v364 = vadd.f32 %v355, %v361
          %v365 = vmax.f32 %v363, 0.0
          %v366 = vmax.f32 %v364, 0.0
          %v367 = vpack.c.bf16 %v366, %v365
          %v369 = vunpack.c.l.b16 %v367
          %v370 = vunpack.c.h.b16 %v367
          %v371 = vpack.c.b16 %v369, %v369
          %v372 = vpack.c.b16 %v370, %v370
          %375 = vst [vmem:[%s255] sm:$0xf] %v371
          %376 = vst [vmem:[%s255 + $0x4] sm:$0xf] %v372
        $region48: #{tpu_custom_call.1} parent=31 // pred_fallthru
          _
        %s377 = sand.u32 %s132, 1
        %s378 = scalar_lea.sflag [#allocation5], %s377
        %s379 = sand.u32 %s132, 1
        %s380 = smul.addr %s379, 8
        %s381 = scalar_lea.vmem [#allocation8], %s380
        // Predicated region
        $region49: #{tpu_custom_call.1} parent=31 // pred_check
          %p382 = pneg %p142
        $region50: #{tpu_custom_call.1} parent=31 // pred_check_branch
          %384 = sbr.rel (%p382) target = $region52
        $region51: #{tpu_custom_call.1} parent=31 // pred_region
          %s385 = smul.u32 2, %s26
          %s386 = ssub.s32 3, %s385
          %p387 = scmp.lt.s32.totalorder %s386, 2
          %s388 = scalar_select %p387, %s386, 2
          %s389 = smul.u32 64, %s388
          %s391 = ssub.s32 128, %s389
          %392 = vsyncadd %s378, %s391
          %p393 = scmp.ne.s32.totalorder 0, %s389
          %s394 = sadd.s32 %s27, %s385
          %s395 = smul.addr %s394, 64
          %s396 = scalar_lea.hbm %s3, %s395
          %s397 = smul.u32 4, %s388
          %s398 = sshll.u32 %s381, 4
          %s399 = int_to_ptr.vmem [resolvable:$true] %s398
          %s400 = sshll.u32 %s397, 4
          %404 = dma.vmem_to_hbm [thread:$0]  (%p393), %s399, %s400, %s396, %s378, 64, 64, 4
        $region52: #{tpu_custom_call.1} parent=31 // pred_fallthru
          _
      $region32: #{tpu_custom_call.1} parent=5 // pred_fallthru
        _
      %p405 = scmp.le.s32.totalorder 2, %s16
      // Predicated region
      $region53: #{tpu_custom_call.1} parent=5 // pred_check
        %p406 = pneg %p405
      $region54: #{tpu_custom_call.1} parent=5 // pred_check_branch
        %408 = sbr.rel (%p406) target = $region56
      $region55: #{tpu_custom_call.1} parent=5 // pred_region
        %s409 = ssub.s32 %s16, 2
        // Predicated region
        $region57: #{tpu_custom_call.1} parent=55 // pred_check
          %p410 = pneg %p148
        $region58: #{tpu_custom_call.1} parent=55 // pred_check_branch
          %412 = sbr.rel (%p410) target = $region60
        $region59: #{tpu_custom_call.1} parent=55 // pred_region
          %s413 = sand.u32 %s133, 1
          %s414 = scalar_lea.sflag [#allocation5], %s413
          %s415 = sand.u32 %s133, 1
          %s416 = smul.addr %s415, 8
          %s417 = scalar_lea.vmem [#allocation8], %s416
          %418 = dma.done %s414, 128
        $region60: #{tpu_custom_call.1} parent=55 // pred_fallthru
          _
      $region56: #{tpu_custom_call.1} parent=5 // pred_fallthru
        _
    $region6: #{tpu_custom_call.1} parent=1 // loop_footer
      %s20 = sadd.s32 1, %s16
    $region7: #{tpu_custom_call.1} parent=1 // loop_footer_branch
      %15 = sbr.rel target = $region3
    $region8: #{tpu_custom_call.1} parent=1 // loop_exit
      _
    %419 = vsyncpa [#allocation4], 1
    %s420 = scalar_lea.sflag [#allocation4], 1
    %421 = vsyncpa %s420, 1
    %422 = vsyncpa [#allocation7], 1
    %423 = vsyncpa [#allocation5], 1
    %s424 = scalar_lea.sflag [#allocation5], 1
    %425 = vsyncpa %s424, 1

</llo_original>
